<compile_context>
chip_gen: v5e
topology: v5e:2x2
jax: 0.10.0
libtpu: 0.0.40
codegen_flags: <defaults>
</compile_context>

<pallas_src>
import jax
import jax.numpy as jnp
from jax.experimental import pallas as pl
from jax.experimental.pallas import tpu as pltpu  # kept for scratch/CompilerParams if sizes grow

NUM_LAYERS = 3


# ----------------------------------------------------------------------------
# Fused kernel: 3 tanh-RNN layers (wavefront-interleaved) + per-step Linear.
# Row layout everywhere: batch-major, row r = b*T + t.
# ----------------------------------------------------------------------------
def _fused_rnn_kernel(
    x_ref,                        # (B*T, D_in)
    wih0_ref, whh0_ref, b0_ref,   # layer 0: (D_in, H), (H, H), (1, H)
    wih1_ref, whh1_ref, b1_ref,   # layer 1: (H, H),   (H, H), (1, H)
    wih2_ref, whh2_ref, b2_ref,   # layer 2: (H, H),   (H, H), (1, H)
    wlin_ref, blin_ref,           # (H, O), (1, O)
    out_ref,                      # (B*T, O)
    hn_ref,                       # (NUM_LAYERS, B, H)
):
    B = hn_ref.shape[1]
    T = x_ref.shape[0] // B
    L = NUM_LAYERS

    # Weights cast to bf16 once (hoisted): single-pass MXU matmuls with f32
    # accumulation.  Bias adds and tanh stay in f32.
    wih = (wih0_ref[...].astype(jnp.bfloat16),
           wih1_ref[...].astype(jnp.bfloat16),
           wih2_ref[...].astype(jnp.bfloat16))
    whh = (whh0_ref[...].astype(jnp.bfloat16),
           whh1_ref[...].astype(jnp.bfloat16),
           whh2_ref[...].astype(jnp.bfloat16))
    bias = (b0_ref[...], b1_ref[...], b2_ref[...])
    wlin = wlin_ref[...].astype(jnp.bfloat16)
    blin = blin_ref[...]

    # Layer-0 input projection hoisted over ALL (b, t) rows (x is external so
    # it never touches the serial path); bias folded in.
    xp0 = jnp.dot(x_ref[...].astype(jnp.bfloat16), wih[0],
                  preferred_element_type=jnp.float32) + bias[0]      # (B*T, H)

    # Wavefront over the (layer, time) dependency grid.  Everything is
    # statically unrolled (trace-time Python); data dependencies alone allow
    # the scheduler to interleave the per-wave independent chains.
    h = {}                                  # (l, b) -> f32 (1, H) hidden state
    for w in range(T + L - 1):
        upd = {}
        for l in range(L):
            t = w - l
            if not (0 <= t < T):
                continue
            for b in range(B):
                row = b * T + t
                if l == 0:
                    z = xp0[row:row + 1, :]
                else:
                    # Per-step input projection of the lower layer's output
                    # produced at the previous wave (cannot be hoisted).
                    z = jnp.dot(h[(l - 1, b)].astype(jnp.bfloat16), wih[l],
                                preferred_element_type=jnp.float32) + bias[l]
                if t > 0:        # h_0 == 0 (PyTorch default): no recurrent term
                    z = z + jnp.dot(h[(l, b)].astype(jnp.bfloat16), whh[l],
                                    preferred_element_type=jnp.float32)
                h_new = jnp.tanh(z)                                   # (1, H)
                upd[(l, b)] = h_new
                if l == L - 1:
                    # Fused output Linear: issued as soon as the top-layer
                    # state is ready; store lands directly in the batch-major
                    # output slab (no wrapper transpose needed).
                    o = jnp.dot(h_new.astype(jnp.bfloat16), wlin,
                                preferred_element_type=jnp.float32) + blin
                    out_ref[row:row + 1, :] = o.astype(out_ref.dtype)
        h.update(upd)            # wave-w values become visible to wave w+1

    # Final hidden state of every layer, PyTorch h_n layout (L, B, H).
    for l in range(L):
        hn_ref[l] = jnp.concatenate([h[(l, b)] for b in range(B)], axis=0)


# ----------------------------------------------------------------------------
# Full forward: matches RNN.forward of the PyTorch module.
#   x: (B, T, in_dim) batch_first -> (outputs (B, T, out_dim), hn (3, B, H))
# ----------------------------------------------------------------------------
@jax.jit
def rnn_forward(x, params):
    B, T, D = x.shape
    H = params["layers"][0]["whh_t"].shape[0]
    O = params["linear"]["w_t"].shape[1]

    # Metadata-only reshape (contiguous collapse, no transpose / data copy):
    # kernel consumes and produces batch-major rows r = b*T + t directly.
    x2d = x.reshape(B * T, D)

    args = [x2d]
    for layer in params["layers"]:
        args += [layer["wih_t"], layer["whh_t"], layer["b"]]
    args += [params["linear"]["w_t"], params["linear"]["b"]]

    # Single no-grid pallas_call; default full-array blocks place everything
    # in VMEM (working set <50 KB, far below any generation's VMEM).
    out2d, hn = pl.pallas_call(
        _fused_rnn_kernel,
        out_shape=(
            jax.ShapeDtypeStruct((B * T, O), jnp.float32),
            jax.ShapeDtypeStruct((NUM_LAYERS, B, H), jnp.float32),
        ),
    )(*args)

    return out2d.reshape(B, T, O), hn


# ----------------------------------------------------------------------------
# Parameter construction (deterministic, PyTorch-style uniform init).
# ----------------------------------------------------------------------------
def init_params(key, in_dim, hid_dim, out_dim, num_layers=NUM_LAYERS):
    params = {"layers": []}
    bound_rnn = 1.0 / jnp.sqrt(jnp.float32(hid_dim))
    for l in range(num_layers):
        d_in = in_dim if l == 0 else hid_dim
        key, k1, k2, k3, k4 = jax.random.split(key, 5)
        w_ih = jax.random.uniform(k1, (hid_dim, d_in), jnp.float32,
                                  -bound_rnn, bound_rnn)
        w_hh = jax.random.uniform(k2, (hid_dim, hid_dim), jnp.float32,
                                  -bound_rnn, bound_rnn)
        b_ih = jax.random.uniform(k3, (hid_dim,), jnp.float32,
                                  -bound_rnn, bound_rnn)
        b_hh = jax.random.uniform(k4, (hid_dim,), jnp.float32,
                                  -bound_rnn, bound_rnn)
        params["layers"].append(
            dict(wih_t=w_ih.T,                       # (d_in, H)
                 whh_t=w_hh.T,                       # (H, H)
                 b=(b_ih + b_hh)[None, :]))          # (1, H) combined bias
    bound_lin = 1.0 / jnp.sqrt(jnp.float32(hid_dim))
    key, k5, k6 = jax.random.split(key, 3)
    w_lin = jax.random.uniform(k5, (out_dim, hid_dim), jnp.float32,
                               -bound_lin, bound_lin)
    b_lin = jax.random.uniform(k6, (out_dim,), jnp.float32,
                               -bound_lin, bound_lin)
    params["linear"] = dict(w_t=w_lin.T, b=b_lin[None, :])
    return params


# ----------------------------------------------------------------------------
# Pure-JAX reference with PyTorch nn.RNN semantics.
# matmul_dtype=jnp.bfloat16 mirrors the kernel's MXU operand precision
# (bf16 operands, f32 accumulation) for a tight equivalence check.
# ----------------------------------------------------------------------------
def _reference_forward(x, params, matmul_dtype=jnp.float32):
    def mm(a, b):
        return jnp.dot(a.astype(matmul_dtype), b.astype(matmul_dtype),
                       preferred_element_type=jnp.float32)

    B, T, _ = x.shape
    seq = x.astype(jnp.float32)                        # (B, T, D)
    hn_rows = []
    for layer in params["layers"]:
        H = layer["whh_t"].shape[0]
        h = jnp.zeros((B, H), jnp.float32)
        hs = []
        for t in range(T):
            h = jnp.tanh(mm(seq[:, t, :], layer["wih_t"])
                         + mm(h, layer["whh_t"]) + layer["b"])
            hs.append(h)
        hn_rows.append(h)
        seq = jnp.stack(hs, axis=1)                    # (B, T, H)
    out = (mm(seq.reshape(B * T, -1), params["linear"]["w_t"])
           + params["linear"]["b"])
    return out.reshape(B, T, -1), jnp.stack(hn_rows, axis=0)


if __name__ == "__main__":
    in_dim, hid_dim, out_dim = 4, 32, 4
    B, T = 2, 8

    key = jax.random.PRNGKey(0)
    key, kx = jax.random.split(key)
    x = jax.random.normal(kx, (B, T, in_dim), jnp.float32)
    params = init_params(key, in_dim, hid_dim, out_dim)

    outputs, hn = rnn_forward(x, params)
    jax.block_until_ready((outputs, hn))

    assert outputs.shape == (B, T, out_dim), outputs.shape
    assert hn.shape == (NUM_LAYERS, B, hid_dim), hn.shape

    # Tight check vs. a reference using the SAME matmul precision as the
    # kernel (bf16 operands, f32 accumulate): validates fused structure,
    # weights, bias handling and time ordering (typical diff ~1e-5).
    ref_out_bf, ref_hn_bf = _reference_forward(x, params, jnp.bfloat16)
    assert float(jnp.max(jnp.abs(outputs - ref_out_bf))) < 1e-3
    assert float(jnp.max(jnp.abs(hn - ref_hn_bf))) < 1e-3

    # Looser check vs. the all-f32 reference: bounds the deliberate bf16-MXU
    # precision trade-off (typically ~1e-2 at these sizes).
    ref_out, ref_hn = _reference_forward(x, params)
    assert float(jnp.max(jnp.abs(outputs - ref_out))) < 1e-1
    assert float(jnp.max(jnp.abs(hn - ref_hn))) < 1e-1

    print("KERNEL_OK")
</pallas_src>

<mosaic_0001>
module attributes {stable_mosaic.version = 11 : i64} {
  func.func @_fused_rnn_kernel(%arg0: memref<16x4xf32, #tpu.memory_space<vmem>>, %arg1: memref<4x32xf32, #tpu.memory_space<vmem>>, %arg2: memref<32x32xf32, #tpu.memory_space<vmem>>, %arg3: memref<1x32xf32, #tpu.memory_space<vmem>>, %arg4: memref<32x32xf32, #tpu.memory_space<vmem>>, %arg5: memref<32x32xf32, #tpu.memory_space<vmem>>, %arg6: memref<1x32xf32, #tpu.memory_space<vmem>>, %arg7: memref<32x32xf32, #tpu.memory_space<vmem>>, %arg8: memref<32x32xf32, #tpu.memory_space<vmem>>, %arg9: memref<1x32xf32, #tpu.memory_space<vmem>>, %arg10: memref<32x4xf32, #tpu.memory_space<vmem>>, %arg11: memref<1x4xf32, #tpu.memory_space<vmem>>, %arg12: memref<16x4xf32, #tpu.memory_space<vmem>>, %arg13: memref<3x2x32xf32, #tpu.memory_space<vmem>>) attributes {dimension_semantics = [], scalar_prefetch = 0 : i64, scratch_operands = 0 : i64, tpu.core_type = #tpu.core_type<tc>} {
    %c0 = arith.constant 0 : index
    %c0_0 = arith.constant 0 : index
    %0 = vector.load %arg1[%c0, %c0_0] : memref<4x32xf32, #tpu.memory_space<vmem>>, vector<4x32xf32>
    %1 = arith.truncf %0 : vector<4x32xf32> to vector<4x32xbf16>
    %c0_1 = arith.constant 0 : index
    %c0_2 = arith.constant 0 : index
    %2 = vector.load %arg4[%c0_1, %c0_2] : memref<32x32xf32, #tpu.memory_space<vmem>>, vector<32x32xf32>
    %3 = arith.truncf %2 : vector<32x32xf32> to vector<32x32xbf16>
    %c0_3 = arith.constant 0 : index
    %c0_4 = arith.constant 0 : index
    %4 = vector.load %arg7[%c0_3, %c0_4] : memref<32x32xf32, #tpu.memory_space<vmem>>, vector<32x32xf32>
    %5 = arith.truncf %4 : vector<32x32xf32> to vector<32x32xbf16>
    %c0_5 = arith.constant 0 : index
    %c0_6 = arith.constant 0 : index
    %6 = vector.load %arg2[%c0_5, %c0_6] : memref<32x32xf32, #tpu.memory_space<vmem>>, vector<32x32xf32>
    %7 = arith.truncf %6 : vector<32x32xf32> to vector<32x32xbf16>
    %c0_7 = arith.constant 0 : index
    %c0_8 = arith.constant 0 : index
    %8 = vector.load %arg5[%c0_7, %c0_8] : memref<32x32xf32, #tpu.memory_space<vmem>>, vector<32x32xf32>
    %9 = arith.truncf %8 : vector<32x32xf32> to vector<32x32xbf16>
    %c0_9 = arith.constant 0 : index
    %c0_10 = arith.constant 0 : index
    %10 = vector.load %arg8[%c0_9, %c0_10] : memref<32x32xf32, #tpu.memory_space<vmem>>, vector<32x32xf32>
    %11 = arith.truncf %10 : vector<32x32xf32> to vector<32x32xbf16>
    %c0_11 = arith.constant 0 : index
    %c0_12 = arith.constant 0 : index
    %12 = vector.load %arg3[%c0_11, %c0_12] : memref<1x32xf32, #tpu.memory_space<vmem>>, vector<1x32xf32>
    %c0_13 = arith.constant 0 : index
    %c0_14 = arith.constant 0 : index
    %13 = vector.load %arg6[%c0_13, %c0_14] : memref<1x32xf32, #tpu.memory_space<vmem>>, vector<1x32xf32>
    %c0_15 = arith.constant 0 : index
    %c0_16 = arith.constant 0 : index
    %14 = vector.load %arg9[%c0_15, %c0_16] : memref<1x32xf32, #tpu.memory_space<vmem>>, vector<1x32xf32>
    %c0_17 = arith.constant 0 : index
    %c0_18 = arith.constant 0 : index
    %15 = vector.load %arg10[%c0_17, %c0_18] : memref<32x4xf32, #tpu.memory_space<vmem>>, vector<32x4xf32>
    %16 = arith.truncf %15 : vector<32x4xf32> to vector<32x4xbf16>
    %c0_19 = arith.constant 0 : index
    %c0_20 = arith.constant 0 : index
    %17 = vector.load %arg11[%c0_19, %c0_20] : memref<1x4xf32, #tpu.memory_space<vmem>>, vector<1x4xf32>
    %c0_21 = arith.constant 0 : index
    %c0_22 = arith.constant 0 : index
    %18 = vector.load %arg0[%c0_21, %c0_22] : memref<16x4xf32, #tpu.memory_space<vmem>>, vector<16x4xf32>
    %19 = arith.truncf %18 : vector<16x4xf32> to vector<16x4xbf16>
    %cst = arith.constant dense<0.000000e+00> : vector<16x32xf32>
    %20 = tpu.matmul %19, %1, %cst {dimension_numbers = #tpu.dot_dimension_numbers<[1], [0], [0], [1], [0, 0, 1, 1], [], []>} : vector<16x4xbf16>, vector<4x32xbf16>, vector<16x32xf32> -> vector<16x32xf32>
    %21 = vector.broadcast %12 : vector<1x32xf32> to vector<16x32xf32>
    %22 = arith.addf %20, %21 : vector<16x32xf32>
    %23 = vector.extract_strided_slice %22 {offsets = [0, 0], sizes = [1, 32], strides = [1, 1]} : vector<16x32xf32> to vector<1x32xf32>
    %24 = math.tanh %23 : vector<1x32xf32>
    %25 = vector.extract_strided_slice %22 {offsets = [8, 0], sizes = [1, 32], strides = [1, 1]} : vector<16x32xf32> to vector<1x32xf32>
    %26 = math.tanh %25 : vector<1x32xf32>
    %27 = vector.extract_strided_slice %22 {offsets = [1, 0], sizes = [1, 32], strides = [1, 1]} : vector<16x32xf32> to vector<1x32xf32>
    %28 = arith.truncf %24 : vector<1x32xf32> to vector<1x32xbf16>
    %cst_23 = arith.constant dense<0.000000e+00> : vector<1x32xf32>
    %29 = tpu.matmul %28, %7, %cst_23 {dimension_numbers = #tpu.dot_dimension_numbers<[1], [0], [0], [1], [0, 0, 1, 1], [], []>} : vector<1x32xbf16>, vector<32x32xbf16>, vector<1x32xf32> -> vector<1x32xf32>
    %30 = arith.addf %27, %29 : vector<1x32xf32>
    %31 = math.tanh %30 : vector<1x32xf32>
    %32 = vector.extract_strided_slice %22 {offsets = [9, 0], sizes = [1, 32], strides = [1, 1]} : vector<16x32xf32> to vector<1x32xf32>
    %33 = arith.truncf %26 : vector<1x32xf32> to vector<1x32xbf16>
    %cst_24 = arith.constant dense<0.000000e+00> : vector<1x32xf32>
    %34 = tpu.matmul %33, %7, %cst_24 {dimension_numbers = #tpu.dot_dimension_numbers<[1], [0], [0], [1], [0, 0, 1, 1], [], []>} : vector<1x32xbf16>, vector<32x32xbf16>, vector<1x32xf32> -> vector<1x32xf32>
    %35 = arith.addf %32, %34 : vector<1x32xf32>
    %36 = math.tanh %35 : vector<1x32xf32>
    %37 = arith.truncf %24 : vector<1x32xf32> to vector<1x32xbf16>
    %cst_25 = arith.constant dense<0.000000e+00> : vector<1x32xf32>
    %38 = tpu.matmul %37, %3, %cst_25 {dimension_numbers = #tpu.dot_dimension_numbers<[1], [0], [0], [1], [0, 0, 1, 1], [], []>} : vector<1x32xbf16>, vector<32x32xbf16>, vector<1x32xf32> -> vector<1x32xf32>
    %39 = arith.addf %38, %13 : vector<1x32xf32>
    %40 = math.tanh %39 : vector<1x32xf32>
    %41 = arith.truncf %26 : vector<1x32xf32> to vector<1x32xbf16>
    %cst_26 = arith.constant dense<0.000000e+00> : vector<1x32xf32>
    %42 = tpu.matmul %41, %3, %cst_26 {dimension_numbers = #tpu.dot_dimension_numbers<[1], [0], [0], [1], [0, 0, 1, 1], [], []>} : vector<1x32xbf16>, vector<32x32xbf16>, vector<1x32xf32> -> vector<1x32xf32>
    %43 = arith.addf %42, %13 : vector<1x32xf32>
    %44 = math.tanh %43 : vector<1x32xf32>
    %45 = vector.extract_strided_slice %22 {offsets = [2, 0], sizes = [1, 32], strides = [1, 1]} : vector<16x32xf32> to vector<1x32xf32>
    %46 = arith.truncf %31 : vector<1x32xf32> to vector<1x32xbf16>
    %cst_27 = arith.constant dense<0.000000e+00> : vector<1x32xf32>
    %47 = tpu.matmul %46, %7, %cst_27 {dimension_numbers = #tpu.dot_dimension_numbers<[1], [0], [0], [1], [0, 0, 1, 1], [], []>} : vector<1x32xbf16>, vector<32x32xbf16>, vector<1x32xf32> -> vector<1x32xf32>
    %48 = arith.addf %45, %47 : vector<1x32xf32>
    %49 = math.tanh %48 : vector<1x32xf32>
    %50 = vector.extract_strided_slice %22 {offsets = [10, 0], sizes = [1, 32], strides = [1, 1]} : vector<16x32xf32> to vector<1x32xf32>
    %51 = arith.truncf %36 : vector<1x32xf32> to vector<1x32xbf16>
    %cst_28 = arith.constant dense<0.000000e+00> : vector<1x32xf32>
    %52 = tpu.matmul %51, %7, %cst_28 {dimension_numbers = #tpu.dot_dimension_numbers<[1], [0], [0], [1], [0, 0, 1, 1], [], []>} : vector<1x32xbf16>, vector<32x32xbf16>, vector<1x32xf32> -> vector<1x32xf32>
    %53 = arith.addf %50, %52 : vector<1x32xf32>
    %54 = math.tanh %53 : vector<1x32xf32>
    %55 = arith.truncf %31 : vector<1x32xf32> to vector<1x32xbf16>
    %cst_29 = arith.constant dense<0.000000e+00> : vector<1x32xf32>
    %56 = tpu.matmul %55, %3, %cst_29 {dimension_numbers = #tpu.dot_dimension_numbers<[1], [0], [0], [1], [0, 0, 1, 1], [], []>} : vector<1x32xbf16>, vector<32x32xbf16>, vector<1x32xf32> -> vector<1x32xf32>
    %57 = arith.addf %56, %13 : vector<1x32xf32>
    %58 = arith.truncf %40 : vector<1x32xf32> to vector<1x32xbf16>
    %cst_30 = arith.constant dense<0.000000e+00> : vector<1x32xf32>
    %59 = tpu.matmul %58, %9, %cst_30 {dimension_numbers = #tpu.dot_dimension_numbers<[1], [0], [0], [1], [0, 0, 1, 1], [], []>} : vector<1x32xbf16>, vector<32x32xbf16>, vector<1x32xf32> -> vector<1x32xf32>
    %60 = arith.addf %57, %59 : vector<1x32xf32>
    %61 = math.tanh %60 : vector<1x32xf32>
    %62 = arith.truncf %36 : vector<1x32xf32> to vector<1x32xbf16>
    %cst_31 = arith.constant dense<0.000000e+00> : vector<1x32xf32>
    %63 = tpu.matmul %62, %3, %cst_31 {dimension_numbers = #tpu.dot_dimension_numbers<[1], [0], [0], [1], [0, 0, 1, 1], [], []>} : vector<1x32xbf16>, vector<32x32xbf16>, vector<1x32xf32> -> vector<1x32xf32>
    %64 = arith.addf %63, %13 : vector<1x32xf32>
    %65 = arith.truncf %44 : vector<1x32xf32> to vector<1x32xbf16>
    %cst_32 = arith.constant dense<0.000000e+00> : vector<1x32xf32>
    %66 = tpu.matmul %65, %9, %cst_32 {dimension_numbers = #tpu.dot_dimension_numbers<[1], [0], [0], [1], [0, 0, 1, 1], [], []>} : vector<1x32xbf16>, vector<32x32xbf16>, vector<1x32xf32> -> vector<1x32xf32>
    %67 = arith.addf %64, %66 : vector<1x32xf32>
    %68 = math.tanh %67 : vector<1x32xf32>
    %69 = arith.truncf %40 : vector<1x32xf32> to vector<1x32xbf16>
    %cst_33 = arith.constant dense<0.000000e+00> : vector<1x32xf32>
    %70 = tpu.matmul %69, %5, %cst_33 {dimension_numbers = #tpu.dot_dimension_numbers<[1], [0], [0], [1], [0, 0, 1, 1], [], []>} : vector<1x32xbf16>, vector<32x32xbf16>, vector<1x32xf32> -> vector<1x32xf32>
    %71 = arith.addf %70, %14 : vector<1x32xf32>
    %72 = math.tanh %71 : vector<1x32xf32>
    %73 = arith.truncf %72 : vector<1x32xf32> to vector<1x32xbf16>
    %cst_34 = arith.constant dense<0.000000e+00> : vector<1x4xf32>
    %74 = tpu.matmul %73, %16, %cst_34 {dimension_numbers = #tpu.dot_dimension_numbers<[1], [0], [0], [1], [0, 0, 1, 1], [], []>} : vector<1x32xbf16>, vector<32x4xbf16>, vector<1x4xf32> -> vector<1x4xf32>
    %75 = arith.addf %74, %17 : vector<1x4xf32>
    %c0_35 = arith.constant 0 : index
    %c0_36 = arith.constant 0 : index
    %76 = vector.load %arg12[%c0_35, %c0_36] : memref<16x4xf32, #tpu.memory_space<vmem>>, vector<1x4xf32>
    tpu.vector_store %arg12[%c0_35, %c0_36], %75 {strides = array<i32>} : memref<16x4xf32, #tpu.memory_space<vmem>>, vector<1x4xf32>,
    %77 = arith.truncf %44 : vector<1x32xf32> to vector<1x32xbf16>
    %cst_37 = arith.constant dense<0.000000e+00> : vector<1x32xf32>
    %78 = tpu.matmul %77, %5, %cst_37 {dimension_numbers = #tpu.dot_dimension_numbers<[1], [0], [0], [1], [0, 0, 1, 1], [], []>} : vector<1x32xbf16>, vector<32x32xbf16>, vector<1x32xf32> -> vector<1x32xf32>
    %79 = arith.addf %78, %14 : vector<1x32xf32>
    %80 = math.tanh %79 : vector<1x32xf32>
    %81 = arith.truncf %80 : vector<1x32xf32> to vector<1x32xbf16>
    %cst_38 = arith.constant dense<0.000000e+00> : vector<1x4xf32>
    %82 = tpu.matmul %81, %16, %cst_38 {dimension_numbers = #tpu.dot_dimension_numbers<[1], [0], [0], [1], [0, 0, 1, 1], [], []>} : vector<1x32xbf16>, vector<32x4xbf16>, vector<1x4xf32> -> vector<1x4xf32>
    %83 = arith.addf %82, %17 : vector<1x4xf32>
    %c8 = arith.constant 8 : index
    %c0_39 = arith.constant 0 : index
    %84 = vector.load %arg12[%c8, %c0_39] : memref<16x4xf32, #tpu.memory_space<vmem>>, vector<1x4xf32>
    tpu.vector_store %arg12[%c8, %c0_39], %83 {strides = array<i32>} : memref<16x4xf32, #tpu.memory_space<vmem>>, vector<1x4xf32>,
    %85 = vector.extract_strided_slice %22 {offsets = [3, 0], sizes = [1, 32], strides = [1, 1]} : vector<16x32xf32> to vector<1x32xf32>
    %86 = arith.truncf %49 : vector<1x32xf32> to vector<1x32xbf16>
    %cst_40 = arith.constant dense<0.000000e+00> : vector<1x32xf32>
    %87 = tpu.matmul %86, %7, %cst_40 {dimension_numbers = #tpu.dot_dimension_numbers<[1], [0], [0], [1], [0, 0, 1, 1], [], []>} : vector<1x32xbf16>, vector<32x32xbf16>, vector<1x32xf32> -> vector<1x32xf32>
    %88 = arith.addf %85, %87 : vector<1x32xf32>
    %89 = math.tanh %88 : vector<1x32xf32>
    %90 = vector.extract_strided_slice %22 {offsets = [11, 0], sizes = [1, 32], strides = [1, 1]} : vector<16x32xf32> to vector<1x32xf32>
    %91 = arith.truncf %54 : vector<1x32xf32> to vector<1x32xbf16>
    %cst_41 = arith.constant dense<0.000000e+00> : vector<1x32xf32>
    %92 = tpu.matmul %91, %7, %cst_41 {dimension_numbers = #tpu.dot_dimension_numbers<[1], [0], [0], [1], [0, 0, 1, 1], [], []>} : vector<1x32xbf16>, vector<32x32xbf16>, vector<1x32xf32> -> vector<1x32xf32>
    %93 = arith.addf %90, %92 : vector<1x32xf32>
    %94 = math.tanh %93 : vector<1x32xf32>
    %95 = arith.truncf %49 : vector<1x32xf32> to vector<1x32xbf16>
    %cst_42 = arith.constant dense<0.000000e+00> : vector<1x32xf32>
    %96 = tpu.matmul %95, %3, %cst_42 {dimension_numbers = #tpu.dot_dimension_numbers<[1], [0], [0], [1], [0, 0, 1, 1], [], []>} : vector<1x32xbf16>, vector<32x32xbf16>, vector<1x32xf32> -> vector<1x32xf32>
    %97 = arith.addf %96, %13 : vector<1x32xf32>
    %98 = arith.truncf %61 : vector<1x32xf32> to vector<1x32xbf16>
    %cst_43 = arith.constant dense<0.000000e+00> : vector<1x32xf32>
    %99 = tpu.matmul %98, %9, %cst_43 {dimension_numbers = #tpu.dot_dimension_numbers<[1], [0], [0], [1], [0, 0, 1, 1], [], []>} : vector<1x32xbf16>, vector<32x32xbf16>, vector<1x32xf32> -> vector<1x32xf32>
    %100 = arith.addf %97, %99 : vector<1x32xf32>
    %101 = math.tanh %100 : vector<1x32xf32>
    %102 = arith.truncf %54 : vector<1x32xf32> to vector<1x32xbf16>
    %cst_44 = arith.constant dense<0.000000e+00> : vector<1x32xf32>
    %103 = tpu.matmul %102, %3, %cst_44 {dimension_numbers = #tpu.dot_dimension_numbers<[1], [0], [0], [1], [0, 0, 1, 1], [], []>} : vector<1x32xbf16>, vector<32x32xbf16>, vector<1x32xf32> -> vector<1x32xf32>
    %104 = arith.addf %103, %13 : vector<1x32xf32>
    %105 = arith.truncf %68 : vector<1x32xf32> to vector<1x32xbf16>
    %cst_45 = arith.constant dense<0.000000e+00> : vector<1x32xf32>
    %106 = tpu.matmul %105, %9, %cst_45 {dimension_numbers = #tpu.dot_dimension_numbers<[1], [0], [0], [1], [0, 0, 1, 1], [], []>} : vector<1x32xbf16>, vector<32x32xbf16>, vector<1x32xf32> -> vector<1x32xf32>
    %107 = arith.addf %104, %106 : vector<1x32xf32>
    %108 = math.tanh %107 : vector<1x32xf32>
    %109 = arith.truncf %61 : vector<1x32xf32> to vector<1x32xbf16>
    %cst_46 = arith.constant dense<0.000000e+00> : vector<1x32xf32>
    %110 = tpu.matmul %109, %5, %cst_46 {dimension_numbers = #tpu.dot_dimension_numbers<[1], [0], [0], [1], [0, 0, 1, 1], [], []>} : vector<1x32xbf16>, vector<32x32xbf16>, vector<1x32xf32> -> vector<1x32xf32>
    %111 = arith.addf %110, %14 : vector<1x32xf32>
    %112 = arith.truncf %72 : vector<1x32xf32> to vector<1x32xbf16>
    %cst_47 = arith.constant dense<0.000000e+00> : vector<1x32xf32>
    %113 = tpu.matmul %112, %11, %cst_47 {dimension_numbers = #tpu.dot_dimension_numbers<[1], [0], [0], [1], [0, 0, 1, 1], [], []>} : vector<1x32xbf16>, vector<32x32xbf16>, vector<1x32xf32> -> vector<1x32xf32>
    %114 = arith.addf %111, %113 : vector<1x32xf32>
    %115 = math.tanh %114 : vector<1x32xf32>
    %116 = arith.truncf %115 : vector<1x32xf32> to vector<1x32xbf16>
    %cst_48 = arith.constant dense<0.000000e+00> : vector<1x4xf32>
    %117 = tpu.matmul %116, %16, %cst_48 {dimension_numbers = #tpu.dot_dimension_numbers<[1], [0], [0], [1], [0, 0, 1, 1], [], []>} : vector<1x32xbf16>, vector<32x4xbf16>, vector<1x4xf32> -> vector<1x4xf32>
    %118 = arith.addf %117, %17 : vector<1x4xf32>
    %c1 = arith.constant 1 : index
    %c0_49 = arith.constant 0 : index
    %119 = vector.load %arg12[%c1, %c0_49] : memref<16x4xf32, #tpu.memory_space<vmem>>, vector<1x4xf32>
    tpu.vector_store %arg12[%c1, %c0_49], %118 {strides = array<i32>} : memref<16x4xf32, #tpu.memory_space<vmem>>, vector<1x4xf32>,
    %120 = arith.truncf %68 : vector<1x32xf32> to vector<1x32xbf16>
    %cst_50 = arith.constant dense<0.000000e+00> : vector<1x32xf32>
    %121 = tpu.matmul %120, %5, %cst_50 {dimension_numbers = #tpu.dot_dimension_numbers<[1], [0], [0], [1], [0, 0, 1, 1], [], []>} : vector<1x32xbf16>, vector<32x32xbf16>, vector<1x32xf32> -> vector<1x32xf32>
    %122 = arith.addf %121, %14 : vector<1x32xf32>
    %123 = arith.truncf %80 : vector<1x32xf32> to vector<1x32xbf16>
    %cst_51 = arith.constant dense<0.000000e+00> : vector<1x32xf32>
    %124 = tpu.matmul %123, %11, %cst_51 {dimension_numbers = #tpu.dot_dimension_numbers<[1], [0], [0], [1], [0, 0, 1, 1], [], []>} : vector<1x32xbf16>, vector<32x32xbf16>, vector<1x32xf32> -> vector<1x32xf32>
    %125 = arith.addf %122, %124 : vector<1x32xf32>
    %126 = math.tanh %125 : vector<1x32xf32>
    %127 = arith.truncf %126 : vector<1x32xf32> to vector<1x32xbf16>
    %cst_52 = arith.constant dense<0.000000e+00> : vector<1x4xf32>
    %128 = tpu.matmul %127, %16, %cst_52 {dimension_numbers = #tpu.dot_dimension_numbers<[1], [0], [0], [1], [0, 0, 1, 1], [], []>} : vector<1x32xbf16>, vector<32x4xbf16>, vector<1x4xf32> -> vector<1x4xf32>
    %129 = arith.addf %128, %17 : vector<1x4xf32>
    %c9 = arith.constant 9 : index
    %c0_53 = arith.constant 0 : index
    %130 = vector.load %arg12[%c9, %c0_53] : memref<16x4xf32, #tpu.memory_space<vmem>>, vector<1x4xf32>
    tpu.vector_store %arg12[%c9, %c0_53], %129 {strides = array<i32>} : memref<16x4xf32, #tpu.memory_space<vmem>>, vector<1x4xf32>,
    %131 = vector.extract_strided_slice %22 {offsets = [4, 0], sizes = [1, 32], strides = [1, 1]} : vector<16x32xf32> to vector<1x32xf32>
    %132 = arith.truncf %89 : vector<1x32xf32> to vector<1x32xbf16>
    %cst_54 = arith.constant dense<0.000000e+00> : vector<1x32xf32>
    %133 = tpu.matmul %132, %7, %cst_54 {dimension_numbers = #tpu.dot_dimension_numbers<[1], [0], [0], [1], [0, 0, 1, 1], [], []>} : vector<1x32xbf16>, vector<32x32xbf16>, vector<1x32xf32> -> vector<1x32xf32>
    %134 = arith.addf %131, %133 : vector<1x32xf32>
    %135 = math.tanh %134 : vector<1x32xf32>
    %136 = vector.extract_strided_slice %22 {offsets = [12, 0], sizes = [1, 32], strides = [1, 1]} : vector<16x32xf32> to vector<1x32xf32>
    %137 = arith.truncf %94 : vector<1x32xf32> to vector<1x32xbf16>
    %cst_55 = arith.constant dense<0.000000e+00> : vector<1x32xf32>
    %138 = tpu.matmul %137, %7, %cst_55 {dimension_numbers = #tpu.dot_dimension_numbers<[1], [0], [0], [1], [0, 0, 1, 1], [], []>} : vector<1x32xbf16>, vector<32x32xbf16>, vector<1x32xf32> -> vector<1x32xf32>
    %139 = arith.addf %136, %138 : vector<1x32xf32>
    %140 = math.tanh %139 : vector<1x32xf32>
    %141 = arith.truncf %89 : vector<1x32xf32> to vector<1x32xbf16>
    %cst_56 = arith.constant dense<0.000000e+00> : vector<1x32xf32>
    %142 = tpu.matmul %141, %3, %cst_56 {dimension_numbers = #tpu.dot_dimension_numbers<[1], [0], [0], [1], [0, 0, 1, 1], [], []>} : vector<1x32xbf16>, vector<32x32xbf16>, vector<1x32xf32> -> vector<1x32xf32>
    %143 = arith.addf %142, %13 : vector<1x32xf32>
    %144 = arith.truncf %101 : vector<1x32xf32> to vector<1x32xbf16>
    %cst_57 = arith.constant dense<0.000000e+00> : vector<1x32xf32>
    %145 = tpu.matmul %144, %9, %cst_57 {dimension_numbers = #tpu.dot_dimension_numbers<[1], [0], [0], [1], [0, 0, 1, 1], [], []>} : vector<1x32xbf16>, vector<32x32xbf16>, vector<1x32xf32> -> vector<1x32xf32>
    %146 = arith.addf %143, %145 : vector<1x32xf32>
    %147 = math.tanh %146 : vector<1x32xf32>
    %148 = arith.truncf %94 : vector<1x32xf32> to vector<1x32xbf16>
    %cst_58 = arith.constant dense<0.000000e+00> : vector<1x32xf32>
    %149 = tpu.matmul %148, %3, %cst_58 {dimension_numbers = #tpu.dot_dimension_numbers<[1], [0], [0], [1], [0, 0, 1, 1], [], []>} : vector<1x32xbf16>, vector<32x32xbf16>, vector<1x32xf32> -> vector<1x32xf32>
    %150 = arith.addf %149, %13 : vector<1x32xf32>
    %151 = arith.truncf %108 : vector<1x32xf32> to vector<1x32xbf16>
    %cst_59 = arith.constant dense<0.000000e+00> : vector<1x32xf32>
    %152 = tpu.matmul %151, %9, %cst_59 {dimension_numbers = #tpu.dot_dimension_numbers<[1], [0], [0], [1], [0, 0, 1, 1], [], []>} : vector<1x32xbf16>, vector<32x32xbf16>, vector<1x32xf32> -> vector<1x32xf32>
    %153 = arith.addf %150, %152 : vector<1x32xf32>
    %154 = math.tanh %153 : vector<1x32xf32>
    %155 = arith.truncf %101 : vector<1x32xf32> to vector<1x32xbf16>
    %cst_60 = arith.constant dense<0.000000e+00> : vector<1x32xf32>
    %156 = tpu.matmul %155, %5, %cst_60 {dimension_numbers = #tpu.dot_dimension_numbers<[1], [0], [0], [1], [0, 0, 1, 1], [], []>} : vector<1x32xbf16>, vector<32x32xbf16>, vector<1x32xf32> -> vector<1x32xf32>
    %157 = arith.addf %156, %14 : vector<1x32xf32>
    %158 = arith.truncf %115 : vector<1x32xf32> to vector<1x32xbf16>
    %cst_61 = arith.constant dense<0.000000e+00> : vector<1x32xf32>
    %159 = tpu.matmul %158, %11, %cst_61 {dimension_numbers = #tpu.dot_dimension_numbers<[1], [0], [0], [1], [0, 0, 1, 1], [], []>} : vector<1x32xbf16>, vector<32x32xbf16>, vector<1x32xf32> -> vector<1x32xf32>
    %160 = arith.addf %157, %159 : vector<1x32xf32>
    %161 = math.tanh %160 : vector<1x32xf32>
    %162 = arith.truncf %161 : vector<1x32xf32> to vector<1x32xbf16>
    %cst_62 = arith.constant dense<0.000000e+00> : vector<1x4xf32>
    %163 = tpu.matmul %162, %16, %cst_62 {dimension_numbers = #tpu.dot_dimension_numbers<[1], [0], [0], [1], [0, 0, 1, 1], [], []>} : vector<1x32xbf16>, vector<32x4xbf16>, vector<1x4xf32> -> vector<1x4xf32>
    %164 = arith.addf %163, %17 : vector<1x4xf32>
    %c2 = arith.constant 2 : index
    %c0_63 = arith.constant 0 : index
    %165 = vector.load %arg12[%c2, %c0_63] : memref<16x4xf32, #tpu.memory_space<vmem>>, vector<1x4xf32>
    tpu.vector_store %arg12[%c2, %c0_63], %164 {strides = array<i32>} : memref<16x4xf32, #tpu.memory_space<vmem>>, vector<1x4xf32>,
    %166 = arith.truncf %108 : vector<1x32xf32> to vector<1x32xbf16>
    %cst_64 = arith.constant dense<0.000000e+00> : vector<1x32xf32>
    %167 = tpu.matmul %166, %5, %cst_64 {dimension_numbers = #tpu.dot_dimension_numbers<[1], [0], [0], [1], [0, 0, 1, 1], [], []>} : vector<1x32xbf16>, vector<32x32xbf16>, vector<1x32xf32> -> vector<1x32xf32>
    %168 = arith.addf %167, %14 : vector<1x32xf32>
    %169 = arith.truncf %126 : vector<1x32xf32> to vector<1x32xbf16>
    %cst_65 = arith.constant dense<0.000000e+00> : vector<1x32xf32>
    %170 = tpu.matmul %169, %11, %cst_65 {dimension_numbers = #tpu.dot_dimension_numbers<[1], [0], [0], [1], [0, 0, 1, 1], [], []>} : vector<1x32xbf16>, vector<32x32xbf16>, vector<1x32xf32> -> vector<1x32xf32>
    %171 = arith.addf %168, %170 : vector<1x32xf32>
    %172 = math.tanh %171 : vector<1x32xf32>
    %173 = arith.truncf %172 : vector<1x32xf32> to vector<1x32xbf16>
    %cst_66 = arith.constant dense<0.000000e+00> : vector<1x4xf32>
    %174 = tpu.matmul %173, %16, %cst_66 {dimension_numbers = #tpu.dot_dimension_numbers<[1], [0], [0], [1], [0, 0, 1, 1], [], []>} : vector<1x32xbf16>, vector<32x4xbf16>, vector<1x4xf32> -> vector<1x4xf32>
    %175 = arith.addf %174, %17 : vector<1x4xf32>
    %c10 = arith.constant 10 : index
    %c0_67 = arith.constant 0 : index
    %176 = vector.load %arg12[%c10, %c0_67] : memref<16x4xf32, #tpu.memory_space<vmem>>, vector<1x4xf32>
    tpu.vector_store %arg12[%c10, %c0_67], %175 {strides = array<i32>} : memref<16x4xf32, #tpu.memory_space<vmem>>, vector<1x4xf32>,
    %177 = vector.extract_strided_slice %22 {offsets = [5, 0], sizes = [1, 32], strides = [1, 1]} : vector<16x32xf32> to vector<1x32xf32>
    %178 = arith.truncf %135 : vector<1x32xf32> to vector<1x32xbf16>
    %cst_68 = arith.constant dense<0.000000e+00> : vector<1x32xf32>
    %179 = tpu.matmul %178, %7, %cst_68 {dimension_numbers = #tpu.dot_dimension_numbers<[1], [0], [0], [1], [0, 0, 1, 1], [], []>} : vector<1x32xbf16>, vector<32x32xbf16>, vector<1x32xf32> -> vector<1x32xf32>
    %180 = arith.addf %177, %179 : vector<1x32xf32>
    %181 = math.tanh %180 : vector<1x32xf32>
    %182 = vector.extract_strided_slice %22 {offsets = [13, 0], sizes = [1, 32], strides = [1, 1]} : vector<16x32xf32> to vector<1x32xf32>
    %183 = arith.truncf %140 : vector<1x32xf32> to vector<1x32xbf16>
    %cst_69 = arith.constant dense<0.000000e+00> : vector<1x32xf32>
    %184 = tpu.matmul %183, %7, %cst_69 {dimension_numbers = #tpu.dot_dimension_numbers<[1], [0], [0], [1], [0, 0, 1, 1], [], []>} : vector<1x32xbf16>, vector<32x32xbf16>, vector<1x32xf32> -> vector<1x32xf32>
    %185 = arith.addf %182, %184 : vector<1x32xf32>
    %186 = math.tanh %185 : vector<1x32xf32>
    %187 = arith.truncf %135 : vector<1x32xf32> to vector<1x32xbf16>
    %cst_70 = arith.constant dense<0.000000e+00> : vector<1x32xf32>
    %188 = tpu.matmul %187, %3, %cst_70 {dimension_numbers = #tpu.dot_dimension_numbers<[1], [0], [0], [1], [0, 0, 1, 1], [], []>} : vector<1x32xbf16>, vector<32x32xbf16>, vector<1x32xf32> -> vector<1x32xf32>
    %189 = arith.addf %188, %13 : vector<1x32xf32>
    %190 = arith.truncf %147 : vector<1x32xf32> to vector<1x32xbf16>
    %cst_71 = arith.constant dense<0.000000e+00> : vector<1x32xf32>
    %191 = tpu.matmul %190, %9, %cst_71 {dimension_numbers = #tpu.dot_dimension_numbers<[1], [0], [0], [1], [0, 0, 1, 1], [], []>} : vector<1x32xbf16>, vector<32x32xbf16>, vector<1x32xf32> -> vector<1x32xf32>
    %192 = arith.addf %189, %191 : vector<1x32xf32>
    %193 = math.tanh %192 : vector<1x32xf32>
    %194 = arith.truncf %140 : vector<1x32xf32> to vector<1x32xbf16>
    %cst_72 = arith.constant dense<0.000000e+00> : vector<1x32xf32>
    %195 = tpu.matmul %194, %3, %cst_72 {dimension_numbers = #tpu.dot_dimension_numbers<[1], [0], [0], [1], [0, 0, 1, 1], [], []>} : vector<1x32xbf16>, vector<32x32xbf16>, vector<1x32xf32> -> vector<1x32xf32>
    %196 = arith.addf %195, %13 : vector<1x32xf32>
    %197 = arith.truncf %154 : vector<1x32xf32> to vector<1x32xbf16>
    %cst_73 = arith.constant dense<0.000000e+00> : vector<1x32xf32>
    %198 = tpu.matmul %197, %9, %cst_73 {dimension_numbers = #tpu.dot_dimension_numbers<[1], [0], [0], [1], [0, 0, 1, 1], [], []>} : vector<1x32xbf16>, vector<32x32xbf16>, vector<1x32xf32> -> vector<1x32xf32>
    %199 = arith.addf %196, %198 : vector<1x32xf32>
    %200 = math.tanh %199 : vector<1x32xf32>
    %201 = arith.truncf %147 : vector<1x32xf32> to vector<1x32xbf16>
    %cst_74 = arith.constant dense<0.000000e+00> : vector<1x32xf32>
    %202 = tpu.matmul %201, %5, %cst_74 {dimension_numbers = #tpu.dot_dimension_numbers<[1], [0], [0], [1], [0, 0, 1, 1], [], []>} : vector<1x32xbf16>, vector<32x32xbf16>, vector<1x32xf32> -> vector<1x32xf32>
    %203 = arith.addf %202, %14 : vector<1x32xf32>
    %204 = arith.truncf %161 : vector<1x32xf32> to vector<1x32xbf16>
    %cst_75 = arith.constant dense<0.000000e+00> : vector<1x32xf32>
    %205 = tpu.matmul %204, %11, %cst_75 {dimension_numbers = #tpu.dot_dimension_numbers<[1], [0], [0], [1], [0, 0, 1, 1], [], []>} : vector<1x32xbf16>, vector<32x32xbf16>, vector<1x32xf32> -> vector<1x32xf32>
    %206 = arith.addf %203, %205 : vector<1x32xf32>
    %207 = math.tanh %206 : vector<1x32xf32>
    %208 = arith.truncf %207 : vector<1x32xf32> to vector<1x32xbf16>
    %cst_76 = arith.constant dense<0.000000e+00> : vector<1x4xf32>
    %209 = tpu.matmul %208, %16, %cst_76 {dimension_numbers = #tpu.dot_dimension_numbers<[1], [0], [0], [1], [0, 0, 1, 1], [], []>} : vector<1x32xbf16>, vector<32x4xbf16>, vector<1x4xf32> -> vector<1x4xf32>
    %210 = arith.addf %209, %17 : vector<1x4xf32>
    %c3 = arith.constant 3 : index
    %c0_77 = arith.constant 0 : index
    %211 = vector.load %arg12[%c3, %c0_77] : memref<16x4xf32, #tpu.memory_space<vmem>>, vector<1x4xf32>
    tpu.vector_store %arg12[%c3, %c0_77], %210 {strides = array<i32>} : memref<16x4xf32, #tpu.memory_space<vmem>>, vector<1x4xf32>,
    %212 = arith.truncf %154 : vector<1x32xf32> to vector<1x32xbf16>
    %cst_78 = arith.constant dense<0.000000e+00> : vector<1x32xf32>
    %213 = tpu.matmul %212, %5, %cst_78 {dimension_numbers = #tpu.dot_dimension_numbers<[1], [0], [0], [1], [0, 0, 1, 1], [], []>} : vector<1x32xbf16>, vector<32x32xbf16>, vector<1x32xf32> -> vector<1x32xf32>
    %214 = arith.addf %213, %14 : vector<1x32xf32>
    %215 = arith.truncf %172 : vector<1x32xf32> to vector<1x32xbf16>
    %cst_79 = arith.constant dense<0.000000e+00> : vector<1x32xf32>
    %216 = tpu.matmul %215, %11, %cst_79 {dimension_numbers = #tpu.dot_dimension_numbers<[1], [0], [0], [1], [0, 0, 1, 1], [], []>} : vector<1x32xbf16>, vector<32x32xbf16>, vector<1x32xf32> -> vector<1x32xf32>
    %217 = arith.addf %214, %216 : vector<1x32xf32>
    %218 = math.tanh %217 : vector<1x32xf32>
    %219 = arith.truncf %218 : vector<1x32xf32> to vector<1x32xbf16>
    %cst_80 = arith.constant dense<0.000000e+00> : vector<1x4xf32>
    %220 = tpu.matmul %219, %16, %cst_80 {dimension_numbers = #tpu.dot_dimension_numbers<[1], [0], [0], [1], [0, 0, 1, 1], [], []>} : vector<1x32xbf16>, vector<32x4xbf16>, vector<1x4xf32> -> vector<1x4xf32>
    %221 = arith.addf %220, %17 : vector<1x4xf32>
    %c11 = arith.constant 11 : index
    %c0_81 = arith.constant 0 : index
    %222 = vector.load %arg12[%c11, %c0_81] : memref<16x4xf32, #tpu.memory_space<vmem>>, vector<1x4xf32>
    tpu.vector_store %arg12[%c11, %c0_81], %221 {strides = array<i32>} : memref<16x4xf32, #tpu.memory_space<vmem>>, vector<1x4xf32>,
    %223 = vector.extract_strided_slice %22 {offsets = [6, 0], sizes = [1, 32], strides = [1, 1]} : vector<16x32xf32> to vector<1x32xf32>
    %224 = arith.truncf %181 : vector<1x32xf32> to vector<1x32xbf16>
    %cst_82 = arith.constant dense<0.000000e+00> : vector<1x32xf32>
    %225 = tpu.matmul %224, %7, %cst_82 {dimension_numbers = #tpu.dot_dimension_numbers<[1], [0], [0], [1], [0, 0, 1, 1], [], []>} : vector<1x32xbf16>, vector<32x32xbf16>, vector<1x32xf32> -> vector<1x32xf32>
    %226 = arith.addf %223, %225 : vector<1x32xf32>
    %227 = math.tanh %226 : vector<1x32xf32>
    %228 = vector.extract_strided_slice %22 {offsets = [14, 0], sizes = [1, 32], strides = [1, 1]} : vector<16x32xf32> to vector<1x32xf32>
    %229 = arith.truncf %186 : vector<1x32xf32> to vector<1x32xbf16>
    %cst_83 = arith.constant dense<0.000000e+00> : vector<1x32xf32>
    %230 = tpu.matmul %229, %7, %cst_83 {dimension_numbers = #tpu.dot_dimension_numbers<[1], [0], [0], [1], [0, 0, 1, 1], [], []>} : vector<1x32xbf16>, vector<32x32xbf16>, vector<1x32xf32> -> vector<1x32xf32>
    %231 = arith.addf %228, %230 : vector<1x32xf32>
    %232 = math.tanh %231 : vector<1x32xf32>
    %233 = arith.truncf %181 : vector<1x32xf32> to vector<1x32xbf16>
    %cst_84 = arith.constant dense<0.000000e+00> : vector<1x32xf32>
    %234 = tpu.matmul %233, %3, %cst_84 {dimension_numbers = #tpu.dot_dimension_numbers<[1], [0], [0], [1], [0, 0, 1, 1], [], []>} : vector<1x32xbf16>, vector<32x32xbf16>, vector<1x32xf32> -> vector<1x32xf32>
    %235 = arith.addf %234, %13 : vector<1x32xf32>
    %236 = arith.truncf %193 : vector<1x32xf32> to vector<1x32xbf16>
    %cst_85 = arith.constant dense<0.000000e+00> : vector<1x32xf32>
    %237 = tpu.matmul %236, %9, %cst_85 {dimension_numbers = #tpu.dot_dimension_numbers<[1], [0], [0], [1], [0, 0, 1, 1], [], []>} : vector<1x32xbf16>, vector<32x32xbf16>, vector<1x32xf32> -> vector<1x32xf32>
    %238 = arith.addf %235, %237 : vector<1x32xf32>
    %239 = math.tanh %238 : vector<1x32xf32>
    %240 = arith.truncf %186 : vector<1x32xf32> to vector<1x32xbf16>
    %cst_86 = arith.constant dense<0.000000e+00> : vector<1x32xf32>
    %241 = tpu.matmul %240, %3, %cst_86 {dimension_numbers = #tpu.dot_dimension_numbers<[1], [0], [0], [1], [0, 0, 1, 1], [], []>} : vector<1x32xbf16>, vector<32x32xbf16>, vector<1x32xf32> -> vector<1x32xf32>
    %242 = arith.addf %241, %13 : vector<1x32xf32>
    %243 = arith.truncf %200 : vector<1x32xf32> to vector<1x32xbf16>
    %cst_87 = arith.constant dense<0.000000e+00> : vector<1x32xf32>
    %244 = tpu.matmul %243, %9, %cst_87 {dimension_numbers = #tpu.dot_dimension_numbers<[1], [0], [0], [1], [0, 0, 1, 1], [], []>} : vector<1x32xbf16>, vector<32x32xbf16>, vector<1x32xf32> -> vector<1x32xf32>
    %245 = arith.addf %242, %244 : vector<1x32xf32>
    %246 = math.tanh %245 : vector<1x32xf32>
    %247 = arith.truncf %193 : vector<1x32xf32> to vector<1x32xbf16>
    %cst_88 = arith.constant dense<0.000000e+00> : vector<1x32xf32>
    %248 = tpu.matmul %247, %5, %cst_88 {dimension_numbers = #tpu.dot_dimension_numbers<[1], [0], [0], [1], [0, 0, 1, 1], [], []>} : vector<1x32xbf16>, vector<32x32xbf16>, vector<1x32xf32> -> vector<1x32xf32>
    %249 = arith.addf %248, %14 : vector<1x32xf32>
    %250 = arith.truncf %207 : vector<1x32xf32> to vector<1x32xbf16>
    %cst_89 = arith.constant dense<0.000000e+00> : vector<1x32xf32>
    %251 = tpu.matmul %250, %11, %cst_89 {dimension_numbers = #tpu.dot_dimension_numbers<[1], [0], [0], [1], [0, 0, 1, 1], [], []>} : vector<1x32xbf16>, vector<32x32xbf16>, vector<1x32xf32> -> vector<1x32xf32>
    %252 = arith.addf %249, %251 : vector<1x32xf32>
    %253 = math.tanh %252 : vector<1x32xf32>
    %254 = arith.truncf %253 : vector<1x32xf32> to vector<1x32xbf16>
    %cst_90 = arith.constant dense<0.000000e+00> : vector<1x4xf32>
    %255 = tpu.matmul %254, %16, %cst_90 {dimension_numbers = #tpu.dot_dimension_numbers<[1], [0], [0], [1], [0, 0, 1, 1], [], []>} : vector<1x32xbf16>, vector<32x4xbf16>, vector<1x4xf32> -> vector<1x4xf32>
    %256 = arith.addf %255, %17 : vector<1x4xf32>
    %c4 = arith.constant 4 : index
    %c0_91 = arith.constant 0 : index
    %257 = vector.load %arg12[%c4, %c0_91] : memref<16x4xf32, #tpu.memory_space<vmem>>, vector<1x4xf32>
    tpu.vector_store %arg12[%c4, %c0_91], %256 {strides = array<i32>} : memref<16x4xf32, #tpu.memory_space<vmem>>, vector<1x4xf32>,
    %258 = arith.truncf %200 : vector<1x32xf32> to vector<1x32xbf16>
    %cst_92 = arith.constant dense<0.000000e+00> : vector<1x32xf32>
    %259 = tpu.matmul %258, %5, %cst_92 {dimension_numbers = #tpu.dot_dimension_numbers<[1], [0], [0], [1], [0, 0, 1, 1], [], []>} : vector<1x32xbf16>, vector<32x32xbf16>, vector<1x32xf32> -> vector<1x32xf32>
    %260 = arith.addf %259, %14 : vector<1x32xf32>
    %261 = arith.truncf %218 : vector<1x32xf32> to vector<1x32xbf16>
    %cst_93 = arith.constant dense<0.000000e+00> : vector<1x32xf32>
    %262 = tpu.matmul %261, %11, %cst_93 {dimension_numbers = #tpu.dot_dimension_numbers<[1], [0], [0], [1], [0, 0, 1, 1], [], []>} : vector<1x32xbf16>, vector<32x32xbf16>, vector<1x32xf32> -> vector<1x32xf32>
    %263 = arith.addf %260, %262 : vector<1x32xf32>
    %264 = math.tanh %263 : vector<1x32xf32>
    %265 = arith.truncf %264 : vector<1x32xf32> to vector<1x32xbf16>
    %cst_94 = arith.constant dense<0.000000e+00> : vector<1x4xf32>
    %266 = tpu.matmul %265, %16, %cst_94 {dimension_numbers = #tpu.dot_dimension_numbers<[1], [0], [0], [1], [0, 0, 1, 1], [], []>} : vector<1x32xbf16>, vector<32x4xbf16>, vector<1x4xf32> -> vector<1x4xf32>
    %267 = arith.addf %266, %17 : vector<1x4xf32>
    %c12 = arith.constant 12 : index
    %c0_95 = arith.constant 0 : index
    %268 = vector.load %arg12[%c12, %c0_95] : memref<16x4xf32, #tpu.memory_space<vmem>>, vector<1x4xf32>
    tpu.vector_store %arg12[%c12, %c0_95], %267 {strides = array<i32>} : memref<16x4xf32, #tpu.memory_space<vmem>>, vector<1x4xf32>,
    %269 = vector.extract_strided_slice %22 {offsets = [7, 0], sizes = [1, 32], strides = [1, 1]} : vector<16x32xf32> to vector<1x32xf32>
    %270 = arith.truncf %227 : vector<1x32xf32> to vector<1x32xbf16>
    %cst_96 = arith.constant dense<0.000000e+00> : vector<1x32xf32>
    %271 = tpu.matmul %270, %7, %cst_96 {dimension_numbers = #tpu.dot_dimension_numbers<[1], [0], [0], [1], [0, 0, 1, 1], [], []>} : vector<1x32xbf16>, vector<32x32xbf16>, vector<1x32xf32> -> vector<1x32xf32>
    %272 = arith.addf %269, %271 : vector<1x32xf32>
    %273 = math.tanh %272 : vector<1x32xf32>
    %274 = vector.extract_strided_slice %22 {offsets = [15, 0], sizes = [1, 32], strides = [1, 1]} : vector<16x32xf32> to vector<1x32xf32>
    %275 = arith.truncf %232 : vector<1x32xf32> to vector<1x32xbf16>
    %cst_97 = arith.constant dense<0.000000e+00> : vector<1x32xf32>
    %276 = tpu.matmul %275, %7, %cst_97 {dimension_numbers = #tpu.dot_dimension_numbers<[1], [0], [0], [1], [0, 0, 1, 1], [], []>} : vector<1x32xbf16>, vector<32x32xbf16>, vector<1x32xf32> -> vector<1x32xf32>
    %277 = arith.addf %274, %276 : vector<1x32xf32>
    %278 = math.tanh %277 : vector<1x32xf32>
    %279 = arith.truncf %227 : vector<1x32xf32> to vector<1x32xbf16>
    %cst_98 = arith.constant dense<0.000000e+00> : vector<1x32xf32>
    %280 = tpu.matmul %279, %3, %cst_98 {dimension_numbers = #tpu.dot_dimension_numbers<[1], [0], [0], [1], [0, 0, 1, 1], [], []>} : vector<1x32xbf16>, vector<32x32xbf16>, vector<1x32xf32> -> vector<1x32xf32>
    %281 = arith.addf %280, %13 : vector<1x32xf32>
    %282 = arith.truncf %239 : vector<1x32xf32> to vector<1x32xbf16>
    %cst_99 = arith.constant dense<0.000000e+00> : vector<1x32xf32>
    %283 = tpu.matmul %282, %9, %cst_99 {dimension_numbers = #tpu.dot_dimension_numbers<[1], [0], [0], [1], [0, 0, 1, 1], [], []>} : vector<1x32xbf16>, vector<32x32xbf16>, vector<1x32xf32> -> vector<1x32xf32>
    %284 = arith.addf %281, %283 : vector<1x32xf32>
    %285 = math.tanh %284 : vector<1x32xf32>
    %286 = arith.truncf %232 : vector<1x32xf32> to vector<1x32xbf16>
    %cst_100 = arith.constant dense<0.000000e+00> : vector<1x32xf32>
    %287 = tpu.matmul %286, %3, %cst_100 {dimension_numbers = #tpu.dot_dimension_numbers<[1], [0], [0], [1], [0, 0, 1, 1], [], []>} : vector<1x32xbf16>, vector<32x32xbf16>, vector<1x32xf32> -> vector<1x32xf32>
    %288 = arith.addf %287, %13 : vector<1x32xf32>
    %289 = arith.truncf %246 : vector<1x32xf32> to vector<1x32xbf16>
    %cst_101 = arith.constant dense<0.000000e+00> : vector<1x32xf32>
    %290 = tpu.matmul %289, %9, %cst_101 {dimension_numbers = #tpu.dot_dimension_numbers<[1], [0], [0], [1], [0, 0, 1, 1], [], []>} : vector<1x32xbf16>, vector<32x32xbf16>, vector<1x32xf32> -> vector<1x32xf32>
    %291 = arith.addf %288, %290 : vector<1x32xf32>
    %292 = math.tanh %291 : vector<1x32xf32>
    %293 = arith.truncf %239 : vector<1x32xf32> to vector<1x32xbf16>
    %cst_102 = arith.constant dense<0.000000e+00> : vector<1x32xf32>
    %294 = tpu.matmul %293, %5, %cst_102 {dimension_numbers = #tpu.dot_dimension_numbers<[1], [0], [0], [1], [0, 0, 1, 1], [], []>} : vector<1x32xbf16>, vector<32x32xbf16>, vector<1x32xf32> -> vector<1x32xf32>
    %295 = arith.addf %294, %14 : vector<1x32xf32>
    %296 = arith.truncf %253 : vector<1x32xf32> to vector<1x32xbf16>
    %cst_103 = arith.constant dense<0.000000e+00> : vector<1x32xf32>
    %297 = tpu.matmul %296, %11, %cst_103 {dimension_numbers = #tpu.dot_dimension_numbers<[1], [0], [0], [1], [0, 0, 1, 1], [], []>} : vector<1x32xbf16>, vector<32x32xbf16>, vector<1x32xf32> -> vector<1x32xf32>
    %298 = arith.addf %295, %297 : vector<1x32xf32>
    %299 = math.tanh %298 : vector<1x32xf32>
    %300 = arith.truncf %299 : vector<1x32xf32> to vector<1x32xbf16>
    %cst_104 = arith.constant dense<0.000000e+00> : vector<1x4xf32>
    %301 = tpu.matmul %300, %16, %cst_104 {dimension_numbers = #tpu.dot_dimension_numbers<[1], [0], [0], [1], [0, 0, 1, 1], [], []>} : vector<1x32xbf16>, vector<32x4xbf16>, vector<1x4xf32> -> vector<1x4xf32>
    %302 = arith.addf %301, %17 : vector<1x4xf32>
    %c5 = arith.constant 5 : index
    %c0_105 = arith.constant 0 : index
    %303 = vector.load %arg12[%c5, %c0_105] : memref<16x4xf32, #tpu.memory_space<vmem>>, vector<1x4xf32>
    tpu.vector_store %arg12[%c5, %c0_105], %302 {strides = array<i32>} : memref<16x4xf32, #tpu.memory_space<vmem>>, vector<1x4xf32>,
    %304 = arith.truncf %246 : vector<1x32xf32> to vector<1x32xbf16>
    %cst_106 = arith.constant dense<0.000000e+00> : vector<1x32xf32>
    %305 = tpu.matmul %304, %5, %cst_106 {dimension_numbers = #tpu.dot_dimension_numbers<[1], [0], [0], [1], [0, 0, 1, 1], [], []>} : vector<1x32xbf16>, vector<32x32xbf16>, vector<1x32xf32> -> vector<1x32xf32>
    %306 = arith.addf %305, %14 : vector<1x32xf32>
    %307 = arith.truncf %264 : vector<1x32xf32> to vector<1x32xbf16>
    %cst_107 = arith.constant dense<0.000000e+00> : vector<1x32xf32>
    %308 = tpu.matmul %307, %11, %cst_107 {dimension_numbers = #tpu.dot_dimension_numbers<[1], [0], [0], [1], [0, 0, 1, 1], [], []>} : vector<1x32xbf16>, vector<32x32xbf16>, vector<1x32xf32> -> vector<1x32xf32>
    %309 = arith.addf %306, %308 : vector<1x32xf32>
    %310 = math.tanh %309 : vector<1x32xf32>
    %311 = arith.truncf %310 : vector<1x32xf32> to vector<1x32xbf16>
    %cst_108 = arith.constant dense<0.000000e+00> : vector<1x4xf32>
    %312 = tpu.matmul %311, %16, %cst_108 {dimension_numbers = #tpu.dot_dimension_numbers<[1], [0], [0], [1], [0, 0, 1, 1], [], []>} : vector<1x32xbf16>, vector<32x4xbf16>, vector<1x4xf32> -> vector<1x4xf32>
    %313 = arith.addf %312, %17 : vector<1x4xf32>
    %c13 = arith.constant 13 : index
    %c0_109 = arith.constant 0 : index
    %314 = vector.load %arg12[%c13, %c0_109] : memref<16x4xf32, #tpu.memory_space<vmem>>, vector<1x4xf32>
    tpu.vector_store %arg12[%c13, %c0_109], %313 {strides = array<i32>} : memref<16x4xf32, #tpu.memory_space<vmem>>, vector<1x4xf32>,
    %315 = arith.truncf %273 : vector<1x32xf32> to vector<1x32xbf16>
    %cst_110 = arith.constant dense<0.000000e+00> : vector<1x32xf32>
    %316 = tpu.matmul %315, %3, %cst_110 {dimension_numbers = #tpu.dot_dimension_numbers<[1], [0], [0], [1], [0, 0, 1, 1], [], []>} : vector<1x32xbf16>, vector<32x32xbf16>, vector<1x32xf32> -> vector<1x32xf32>
    %317 = arith.addf %316, %13 : vector<1x32xf32>
    %318 = arith.truncf %285 : vector<1x32xf32> to vector<1x32xbf16>
    %cst_111 = arith.constant dense<0.000000e+00> : vector<1x32xf32>
    %319 = tpu.matmul %318, %9, %cst_111 {dimension_numbers = #tpu.dot_dimension_numbers<[1], [0], [0], [1], [0, 0, 1, 1], [], []>} : vector<1x32xbf16>, vector<32x32xbf16>, vector<1x32xf32> -> vector<1x32xf32>
    %320 = arith.addf %317, %319 : vector<1x32xf32>
    %321 = math.tanh %320 : vector<1x32xf32>
    %322 = arith.truncf %278 : vector<1x32xf32> to vector<1x32xbf16>
    %cst_112 = arith.constant dense<0.000000e+00> : vector<1x32xf32>
    %323 = tpu.matmul %322, %3, %cst_112 {dimension_numbers = #tpu.dot_dimension_numbers<[1], [0], [0], [1], [0, 0, 1, 1], [], []>} : vector<1x32xbf16>, vector<32x32xbf16>, vector<1x32xf32> -> vector<1x32xf32>
    %324 = arith.addf %323, %13 : vector<1x32xf32>
    %325 = arith.truncf %292 : vector<1x32xf32> to vector<1x32xbf16>
    %cst_113 = arith.constant dense<0.000000e+00> : vector<1x32xf32>
    %326 = tpu.matmul %325, %9, %cst_113 {dimension_numbers = #tpu.dot_dimension_numbers<[1], [0], [0], [1], [0, 0, 1, 1], [], []>} : vector<1x32xbf16>, vector<32x32xbf16>, vector<1x32xf32> -> vector<1x32xf32>
    %327 = arith.addf %324, %326 : vector<1x32xf32>
    %328 = math.tanh %327 : vector<1x32xf32>
    %329 = arith.truncf %285 : vector<1x32xf32> to vector<1x32xbf16>
    %cst_114 = arith.constant dense<0.000000e+00> : vector<1x32xf32>
    %330 = tpu.matmul %329, %5, %cst_114 {dimension_numbers = #tpu.dot_dimension_numbers<[1], [0], [0], [1], [0, 0, 1, 1], [], []>} : vector<1x32xbf16>, vector<32x32xbf16>, vector<1x32xf32> -> vector<1x32xf32>
    %331 = arith.addf %330, %14 : vector<1x32xf32>
    %332 = arith.truncf %299 : vector<1x32xf32> to vector<1x32xbf16>
    %cst_115 = arith.constant dense<0.000000e+00> : vector<1x32xf32>
    %333 = tpu.matmul %332, %11, %cst_115 {dimension_numbers = #tpu.dot_dimension_numbers<[1], [0], [0], [1], [0, 0, 1, 1], [], []>} : vector<1x32xbf16>, vector<32x32xbf16>, vector<1x32xf32> -> vector<1x32xf32>
    %334 = arith.addf %331, %333 : vector<1x32xf32>
    %335 = math.tanh %334 : vector<1x32xf32>
    %336 = arith.truncf %335 : vector<1x32xf32> to vector<1x32xbf16>
    %cst_116 = arith.constant dense<0.000000e+00> : vector<1x4xf32>
    %337 = tpu.matmul %336, %16, %cst_116 {dimension_numbers = #tpu.dot_dimension_numbers<[1], [0], [0], [1], [0, 0, 1, 1], [], []>} : vector<1x32xbf16>, vector<32x4xbf16>, vector<1x4xf32> -> vector<1x4xf32>
    %338 = arith.addf %337, %17 : vector<1x4xf32>
    %c6 = arith.constant 6 : index
    %c0_117 = arith.constant 0 : index
    %339 = vector.load %arg12[%c6, %c0_117] : memref<16x4xf32, #tpu.memory_space<vmem>>, vector<1x4xf32>
    tpu.vector_store %arg12[%c6, %c0_117], %338 {strides = array<i32>} : memref<16x4xf32, #tpu.memory_space<vmem>>, vector<1x4xf32>,
    %340 = arith.truncf %292 : vector<1x32xf32> to vector<1x32xbf16>
    %cst_118 = arith.constant dense<0.000000e+00> : vector<1x32xf32>
    %341 = tpu.matmul %340, %5, %cst_118 {dimension_numbers = #tpu.dot_dimension_numbers<[1], [0], [0], [1], [0, 0, 1, 1], [], []>} : vector<1x32xbf16>, vector<32x32xbf16>, vector<1x32xf32> -> vector<1x32xf32>
    %342 = arith.addf %341, %14 : vector<1x32xf32>
    %343 = arith.truncf %310 : vector<1x32xf32> to vector<1x32xbf16>
    %cst_119 = arith.constant dense<0.000000e+00> : vector<1x32xf32>
    %344 = tpu.matmul %343, %11, %cst_119 {dimension_numbers = #tpu.dot_dimension_numbers<[1], [0], [0], [1], [0, 0, 1, 1], [], []>} : vector<1x32xbf16>, vector<32x32xbf16>, vector<1x32xf32> -> vector<1x32xf32>
    %345 = arith.addf %342, %344 : vector<1x32xf32>
    %346 = math.tanh %345 : vector<1x32xf32>
    %347 = arith.truncf %346 : vector<1x32xf32> to vector<1x32xbf16>
    %cst_120 = arith.constant dense<0.000000e+00> : vector<1x4xf32>
    %348 = tpu.matmul %347, %16, %cst_120 {dimension_numbers = #tpu.dot_dimension_numbers<[1], [0], [0], [1], [0, 0, 1, 1], [], []>} : vector<1x32xbf16>, vector<32x4xbf16>, vector<1x4xf32> -> vector<1x4xf32>
    %349 = arith.addf %348, %17 : vector<1x4xf32>
    %c14 = arith.constant 14 : index
    %c0_121 = arith.constant 0 : index
    %350 = vector.load %arg12[%c14, %c0_121] : memref<16x4xf32, #tpu.memory_space<vmem>>, vector<1x4xf32>
    tpu.vector_store %arg12[%c14, %c0_121], %349 {strides = array<i32>} : memref<16x4xf32, #tpu.memory_space<vmem>>, vector<1x4xf32>,
    %351 = arith.truncf %321 : vector<1x32xf32> to vector<1x32xbf16>
    %cst_122 = arith.constant dense<0.000000e+00> : vector<1x32xf32>
    %352 = tpu.matmul %351, %5, %cst_122 {dimension_numbers = #tpu.dot_dimension_numbers<[1], [0], [0], [1], [0, 0, 1, 1], [], []>} : vector<1x32xbf16>, vector<32x32xbf16>, vector<1x32xf32> -> vector<1x32xf32>
    %353 = arith.addf %352, %14 : vector<1x32xf32>
    %354 = arith.truncf %335 : vector<1x32xf32> to vector<1x32xbf16>
    %cst_123 = arith.constant dense<0.000000e+00> : vector<1x32xf32>
    %355 = tpu.matmul %354, %11, %cst_123 {dimension_numbers = #tpu.dot_dimension_numbers<[1], [0], [0], [1], [0, 0, 1, 1], [], []>} : vector<1x32xbf16>, vector<32x32xbf16>, vector<1x32xf32> -> vector<1x32xf32>
    %356 = arith.addf %353, %355 : vector<1x32xf32>
    %357 = math.tanh %356 : vector<1x32xf32>
    %358 = arith.truncf %357 : vector<1x32xf32> to vector<1x32xbf16>
    %cst_124 = arith.constant dense<0.000000e+00> : vector<1x4xf32>
    %359 = tpu.matmul %358, %16, %cst_124 {dimension_numbers = #tpu.dot_dimension_numbers<[1], [0], [0], [1], [0, 0, 1, 1], [], []>} : vector<1x32xbf16>, vector<32x4xbf16>, vector<1x4xf32> -> vector<1x4xf32>
    %360 = arith.addf %359, %17 : vector<1x4xf32>
    %c7 = arith.constant 7 : index
    %c0_125 = arith.constant 0 : index
    %361 = vector.load %arg12[%c7, %c0_125] : memref<16x4xf32, #tpu.memory_space<vmem>>, vector<1x4xf32>
    tpu.vector_store %arg12[%c7, %c0_125], %360 {strides = array<i32>} : memref<16x4xf32, #tpu.memory_space<vmem>>, vector<1x4xf32>,
    %362 = arith.truncf %328 : vector<1x32xf32> to vector<1x32xbf16>
    %cst_126 = arith.constant dense<0.000000e+00> : vector<1x32xf32>
    %363 = tpu.matmul %362, %5, %cst_126 {dimension_numbers = #tpu.dot_dimension_numbers<[1], [0], [0], [1], [0, 0, 1, 1], [], []>} : vector<1x32xbf16>, vector<32x32xbf16>, vector<1x32xf32> -> vector<1x32xf32>
    %364 = arith.addf %363, %14 : vector<1x32xf32>
    %365 = arith.truncf %346 : vector<1x32xf32> to vector<1x32xbf16>
    %cst_127 = arith.constant dense<0.000000e+00> : vector<1x32xf32>
    %366 = tpu.matmul %365, %11, %cst_127 {dimension_numbers = #tpu.dot_dimension_numbers<[1], [0], [0], [1], [0, 0, 1, 1], [], []>} : vector<1x32xbf16>, vector<32x32xbf16>, vector<1x32xf32> -> vector<1x32xf32>
    %367 = arith.addf %364, %366 : vector<1x32xf32>
    %368 = math.tanh %367 : vector<1x32xf32>
    %369 = arith.truncf %368 : vector<1x32xf32> to vector<1x32xbf16>
    %cst_128 = arith.constant dense<0.000000e+00> : vector<1x4xf32>
    %370 = tpu.matmul %369, %16, %cst_128 {dimension_numbers = #tpu.dot_dimension_numbers<[1], [0], [0], [1], [0, 0, 1, 1], [], []>} : vector<1x32xbf16>, vector<32x4xbf16>, vector<1x4xf32> -> vector<1x4xf32>
    %371 = arith.addf %370, %17 : vector<1x4xf32>
    %c15 = arith.constant 15 : index
    %c0_129 = arith.constant 0 : index
    %372 = vector.load %arg12[%c15, %c0_129] : memref<16x4xf32, #tpu.memory_space<vmem>>, vector<1x4xf32>
    tpu.vector_store %arg12[%c15, %c0_129], %371 {strides = array<i32>} : memref<16x4xf32, #tpu.memory_space<vmem>>, vector<1x4xf32>,
    %373 = tpu.concatenate %273, %278 in 0 : vector<1x32xf32>, vector<1x32xf32> -> vector<2x32xf32>
    %c0_130 = arith.constant 0 : index
    %c0_131 = arith.constant 0 : index
    %c0_132 = arith.constant 0 : index
    %374 = vector.load %arg13[%c0_130, %c0_131, %c0_132] : memref<3x2x32xf32, #tpu.memory_space<vmem>>, vector<1x2x32xf32>
    %375 = vector.shape_cast %374 : vector<1x2x32xf32> to vector<2x32xf32>
    %376 = vector.shape_cast %373 : vector<2x32xf32> to vector<1x2x32xf32>
    tpu.vector_store %arg13[%c0_130, %c0_131, %c0_132], %376 {strides = array<i32>} : memref<3x2x32xf32, #tpu.memory_space<vmem>>, vector<1x2x32xf32>,
    %377 = tpu.concatenate %321, %328 in 0 : vector<1x32xf32>, vector<1x32xf32> -> vector<2x32xf32>
    %c1_133 = arith.constant 1 : index
    %c0_134 = arith.constant 0 : index
    %c0_135 = arith.constant 0 : index
    %378 = vector.load %arg13[%c1_133, %c0_134, %c0_135] : memref<3x2x32xf32, #tpu.memory_space<vmem>>, vector<1x2x32xf32>
    %379 = vector.shape_cast %378 : vector<1x2x32xf32> to vector<2x32xf32>
    %380 = vector.shape_cast %377 : vector<2x32xf32> to vector<1x2x32xf32>
    tpu.vector_store %arg13[%c1_133, %c0_134, %c0_135], %380 {strides = array<i32>} : memref<3x2x32xf32, #tpu.memory_space<vmem>>, vector<1x2x32xf32>,
    %381 = tpu.concatenate %357, %368 in 0 : vector<1x32xf32>, vector<1x32xf32> -> vector<2x32xf32>
    %c2_136 = arith.constant 2 : index
    %c0_137 = arith.constant 0 : index
    %c0_138 = arith.constant 0 : index
    %382 = vector.load %arg13[%c2_136, %c0_137, %c0_138] : memref<3x2x32xf32, #tpu.memory_space<vmem>>, vector<1x2x32xf32>
    %383 = vector.shape_cast %382 : vector<1x2x32xf32> to vector<2x32xf32>
    %384 = vector.shape_cast %381 : vector<2x32xf32> to vector<1x2x32xf32>
    tpu.vector_store %arg13[%c2_136, %c0_137, %c0_138], %384 {strides = array<i32>} : memref<3x2x32xf32, #tpu.memory_space<vmem>>, vector<1x2x32xf32>,
    return
  }
}

</mosaic_0001>

<llo_original>
// kernel: rnn_forward.1
$region0: #{rnn_forward.1}
  #allocation0 [shape = 'u32[]', space=smem, size = 0x4, offset = 0x4, fixed_abs, tag = 'smem constant byte address 0x4 - core index']
  #allocation1 [shape = 'u32[72,128]{1,0:T(1,128)}', space=vmem, size = 0x9000, scoped, tag = 'internal scratch']
  %s0 = inlined_call_operand.vmem [shape: f32[16,4], index: 0, kind: input, shape index: {}]
  %s1 = inlined_call_operand.vmem [shape: f32[4,32], index: 1, kind: input, shape index: {}]
  %s2 = inlined_call_operand.vmem [shape: f32[32,32], index: 2, kind: input, shape index: {}]
  %s3 = inlined_call_operand.vmem [shape: f32[1,32], index: 3, kind: input, shape index: {}]
  %s4 = inlined_call_operand.hbm [shape: f32[32,32], index: 4, kind: input, shape index: {}]
  %s5 = inlined_call_operand.hbm [shape: f32[32,32], index: 5, kind: input, shape index: {}]
  %s6 = inlined_call_operand.vmem [shape: f32[1,32], index: 6, kind: input, shape index: {}]
  %s7 = inlined_call_operand.hbm [shape: f32[32,32], index: 7, kind: input, shape index: {}]
  %s8 = inlined_call_operand.hbm [shape: f32[32,32], index: 8, kind: input, shape index: {}]
  %s9 = inlined_call_operand.vmem [shape: f32[1,32], index: 9, kind: input, shape index: {}]
  %s10 = inlined_call_operand.vmem [shape: f32[32,4], index: 10, kind: input, shape index: {}]
  %s11 = inlined_call_operand.vmem [shape: f32[1,4], index: 11, kind: input, shape index: {}]
  %s12 = inlined_call_operand.vmem [shape: f32[16,4], index: 12, kind: output, shape index: {0}]
  %s13 = inlined_call_operand.hbm [shape: f32[3,2,32], index: 13, kind: output, shape index: {1}]
  %14 = xla_tuple %s12, %s13
  %s15 = sld [smem:[#allocation0]]
  $region82: #{rnn_forward.1} parent=0
    _
  %s17 = ssub.s32 1, %s15
  %s18 = scalar_select 0, %s17, %s15
  $region1: #{rnn_forward.1} parent=0
    #allocation2 [shape = 'u8[16384]{0}', space=vmem, size = 0x4000, scoped, tag = 'input window, operand 4, single buffered']
    #allocation3 [shape = 's32[1]{0}', space=sflag, size = 0x4, scoped, tag = 'scoped memory for rnn_forward.1']
    #allocation4 [shape = 's32[1]{0}', space=sflag, size = 0x4, scoped, tag = 'scoped memory for rnn_forward.1']
    #allocation5 [shape = 'u8[16384]{0}', space=vmem, size = 0x4000, scoped, tag = 'input window, operand 5, single buffered']
    #allocation6 [shape = 's32[1]{0}', space=sflag, size = 0x4, scoped, tag = 'scoped memory for rnn_forward.1']
    #allocation7 [shape = 'u8[16384]{0}', space=vmem, size = 0x4000, scoped, tag = 'input window, operand 7, single buffered']
    #allocation8 [shape = 'u8[16384]{0}', space=vmem, size = 0x4000, scoped, tag = 'input window, operand 8, single buffered']
    #allocation9 [shape = 's32[1]{0}', space=sflag, size = 0x4, scoped, tag = 'scoped memory for rnn_forward.1']
    #allocation10 [shape = 'u8[3072]{0}', space=vmem, size = 0xc00, scoped, tag = 'output window, operand 1, single buffered']
    %19 = vsyncpa [#allocation3], 0
    %20 = vsyncpa [#allocation6], 0
    %21 = vsyncpa [#allocation9], 0
    %22 = vsyncpa [#allocation4], 0
    // Predicated region
    $region2: #{rnn_forward.1} parent=1 // pred_check
      _
    $region3: #{rnn_forward.1} parent=1 // pred_check_branch
      %24 = sbr.rel (0) target = $region5
    $region4: #{rnn_forward.1} parent=1 // pred_region
      _
    $region5: #{rnn_forward.1} parent=1 // pred_fallthru
      _
    // Predicated region
    $region6: #{rnn_forward.1} parent=1 // pred_check
      _
    $region7: #{rnn_forward.1} parent=1 // pred_check_branch
      %26 = sbr.rel (0) target = $region9
    $region8: #{rnn_forward.1} parent=1 // pred_region
      _
    $region9: #{rnn_forward.1} parent=1 // pred_fallthru
      _
    // Predicated region
    $region10: #{rnn_forward.1} parent=1 // pred_check
      _
    $region11: #{rnn_forward.1} parent=1 // pred_check_branch
      %28 = sbr.rel (0) target = $region13
    $region12: #{rnn_forward.1} parent=1 // pred_region
      _
    $region13: #{rnn_forward.1} parent=1 // pred_fallthru
      _
    // Predicated region
    $region14: #{rnn_forward.1} parent=1 // pred_check
      _
    $region15: #{rnn_forward.1} parent=1 // pred_check_branch
      %30 = sbr.rel (0) target = $region17
    $region16: #{rnn_forward.1} parent=1 // pred_region
      _
    $region17: #{rnn_forward.1} parent=1 // pred_fallthru
      _
    // Predicated region
    $region18: #{rnn_forward.1} parent=1 // pred_check
      _
    $region19: #{rnn_forward.1} parent=1 // pred_check_branch
      %32 = sbr.rel (0) target = $region21
    $region20: #{rnn_forward.1} parent=1 // pred_region
      %34 = vsyncadd [#allocation3], 0
      %s35 = sshll.u32 %s4, 4
      %s36 = int_to_ptr.hbm [resolvable:$true] %s35
      %s37 = sshll.u32 [#allocation2], 4
      %s38 = int_to_ptr.vmem [resolvable:$true] %s37
      %43 = dma.hbm_to_vmem [thread:$0]  %s36, 512, %s38, [#allocation3], 128, 128, 8
    $region21: #{rnn_forward.1} parent=1 // pred_fallthru
      _
    // Predicated region
    $region22: #{rnn_forward.1} parent=1 // pred_check
      _
    $region23: #{rnn_forward.1} parent=1 // pred_check_branch
      %45 = sbr.rel (0) target = $region25
    $region24: #{rnn_forward.1} parent=1 // pred_region
      %47 = vsyncadd [#allocation6], 0
      %s48 = sshll.u32 %s5, 4
      %s49 = int_to_ptr.hbm [resolvable:$true] %s48
      %s50 = sshll.u32 [#allocation5], 4
      %s51 = int_to_ptr.vmem [resolvable:$true] %s50
      %56 = dma.hbm_to_vmem [thread:$0]  %s49, 512, %s51, [#allocation6], 128, 128, 8
    $region25: #{rnn_forward.1} parent=1 // pred_fallthru
      _
    // Predicated region
    $region26: #{rnn_forward.1} parent=1 // pred_check
      _
    $region27: #{rnn_forward.1} parent=1 // pred_check_branch
      %58 = sbr.rel (0) target = $region29
    $region28: #{rnn_forward.1} parent=1 // pred_region
      _
    $region29: #{rnn_forward.1} parent=1 // pred_fallthru
      _
    // Predicated region
    $region30: #{rnn_forward.1} parent=1 // pred_check
      _
    $region31: #{rnn_forward.1} parent=1 // pred_check_branch
      %60 = sbr.rel (0) target = $region33
    $region32: #{rnn_forward.1} parent=1 // pred_region
      %62 = vsyncadd [#allocation6], 0
      %s63 = sshll.u32 %s7, 4
      %s64 = int_to_ptr.hbm [resolvable:$true] %s63
      %s65 = sshll.u32 [#allocation7], 4
      %s66 = int_to_ptr.vmem [resolvable:$true] %s65
      %71 = dma.hbm_to_vmem [thread:$0]  %s64, 512, %s66, [#allocation6], 128, 128, 8
    $region33: #{rnn_forward.1} parent=1 // pred_fallthru
      _
    // Predicated region
    $region34: #{rnn_forward.1} parent=1 // pred_check
      _
    $region35: #{rnn_forward.1} parent=1 // pred_check_branch
      %73 = sbr.rel (0) target = $region37
    $region36: #{rnn_forward.1} parent=1 // pred_region
      %75 = vsyncadd [#allocation9], 0
      %s76 = sshll.u32 %s8, 4
      %s77 = int_to_ptr.hbm [resolvable:$true] %s76
      %s78 = sshll.u32 [#allocation8], 4
      %s79 = int_to_ptr.vmem [resolvable:$true] %s78
      %84 = dma.hbm_to_vmem [thread:$0]  %s77, 512, %s79, [#allocation9], 128, 128, 8
    $region37: #{rnn_forward.1} parent=1 // pred_fallthru
      _
    // Predicated region
    $region38: #{rnn_forward.1} parent=1 // pred_check
      _
    $region39: #{rnn_forward.1} parent=1 // pred_check_branch
      %86 = sbr.rel (0) target = $region41
    $region40: #{rnn_forward.1} parent=1 // pred_region
      _
    $region41: #{rnn_forward.1} parent=1 // pred_fallthru
      _
    // Predicated region
    $region42: #{rnn_forward.1} parent=1 // pred_check
      _
    $region43: #{rnn_forward.1} parent=1 // pred_check_branch
      %88 = sbr.rel (0) target = $region45
    $region44: #{rnn_forward.1} parent=1 // pred_region
      _
    $region45: #{rnn_forward.1} parent=1 // pred_fallthru
      _
    // Predicated region
    $region46: #{rnn_forward.1} parent=1 // pred_check
      _
    $region47: #{rnn_forward.1} parent=1 // pred_check_branch
      %90 = sbr.rel (0) target = $region49
    $region48: #{rnn_forward.1} parent=1 // pred_region
      _
    $region49: #{rnn_forward.1} parent=1 // pred_fallthru
      _
    // Predicated region
    $region50: #{rnn_forward.1} parent=1 // pred_check
      _
    $region51: #{rnn_forward.1} parent=1 // pred_check_branch
      %92 = sbr.rel (0) target = $region53
    $region52: #{rnn_forward.1} parent=1 // pred_region
      %94 = dma.done [#allocation3], 512
    $region53: #{rnn_forward.1} parent=1 // pred_fallthru
      _
    // Predicated region
    $region54: #{rnn_forward.1} parent=1 // pred_check
      _
    $region55: #{rnn_forward.1} parent=1 // pred_check_branch
      %96 = sbr.rel (0) target = $region57
    $region56: #{rnn_forward.1} parent=1 // pred_region
      %98 = dma.done [#allocation6], 512
    $region57: #{rnn_forward.1} parent=1 // pred_fallthru
      _
    // Predicated region
    $region58: #{rnn_forward.1} parent=1 // pred_check
      _
    $region59: #{rnn_forward.1} parent=1 // pred_check_branch
      %100 = sbr.rel (0) target = $region61
    $region60: #{rnn_forward.1} parent=1 // pred_region
      %102 = dma.done [#allocation6], 512
    $region61: #{rnn_forward.1} parent=1 // pred_fallthru
      _
    // Predicated region
    $region62: #{rnn_forward.1} parent=1 // pred_check
      _
    $region63: #{rnn_forward.1} parent=1 // pred_check_branch
      %104 = sbr.rel (0) target = $region65
    $region64: #{rnn_forward.1} parent=1 // pred_region
      %106 = dma.done [#allocation9], 512
    $region65: #{rnn_forward.1} parent=1 // pred_fallthru
      _
    %v108 = vld [vmem:[%s1] sm:$0xf]
    %v109 = vpack.c.bf16 %v108, %v108
    %v110 = vld [vmem:[#allocation2] sm:$0xff]
    %v111 = vld [vmem:[#allocation2 + $0x8] sm:$0xff]
    %v112 = vld [vmem:[#allocation2 + $0x10] sm:$0xff]
    %v113 = vld [vmem:[#allocation2 + $0x18] sm:$0xff]
    %v114 = vpack.c.bf16 %v111, %v110
    %v115 = vpack.c.bf16 %v113, %v112
    %v116 = vld [vmem:[#allocation7] sm:$0xff]
    %v117 = vld [vmem:[#allocation7 + $0x8] sm:$0xff]
    %v118 = vld [vmem:[#allocation7 + $0x10] sm:$0xff]
    %v119 = vld [vmem:[#allocation7 + $0x18] sm:$0xff]
    %v120 = vpack.c.bf16 %v117, %v116
    %v121 = vpack.c.bf16 %v119, %v118
    %v122 = vld [vmem:[%s2] sm:$0xff]
    %v123 = vld [vmem:[%s2 + $0x8] sm:$0xff]
    %v124 = vld [vmem:[%s2 + $0x10] sm:$0xff]
    %v125 = vld [vmem:[%s2 + $0x18] sm:$0xff]
    %v126 = vpack.c.bf16 %v123, %v122
    %v127 = vpack.c.bf16 %v125, %v124
    %v128 = vld [vmem:[#allocation5] sm:$0xff]
    %v129 = vld [vmem:[#allocation5 + $0x8] sm:$0xff]
    %v130 = vld [vmem:[#allocation5 + $0x10] sm:$0xff]
    %v131 = vld [vmem:[#allocation5 + $0x18] sm:$0xff]
    %v132 = vpack.c.bf16 %v129, %v128
    %v133 = vpack.c.bf16 %v131, %v130
    %v134 = vld [vmem:[#allocation8] sm:$0xff]
    %v135 = vld [vmem:[#allocation8 + $0x8] sm:$0xff]
    %v136 = vld [vmem:[#allocation8 + $0x10] sm:$0xff]
    %v137 = vld [vmem:[#allocation8 + $0x18] sm:$0xff]
    %v138 = vpack.c.bf16 %v135, %v134
    %v139 = vpack.c.bf16 %v137, %v136
    %v140 = vld [vmem:[%s3] sm:$0x1]
    %v141 = vld [vmem:[%s6] sm:$0x1]
    %v142 = vld [vmem:[%s9] sm:$0x1]
    %v143 = vld [vmem:[%s10] sm:$0xff]
    %v144 = vld [vmem:[%s10 + $0x8] sm:$0xff]
    %v145 = vld [vmem:[%s10 + $0x10] sm:$0xff]
    %v146 = vld [vmem:[%s10 + $0x18] sm:$0xff]
    %v147 = vpack.c.bf16 %v144, %v143
    %v148 = vpack.c.bf16 %v146, %v145
    %v149 = vld [vmem:[%s11] sm:$0x1]
    %v150 = vld [vmem:[%s0] sm:$0xff]
    %v151 = vld [vmem:[%s0 + $0x8] sm:$0xff]
    %v152 = vpack.c.bf16 %v151, %v150
    %v154 = vperm.slane %v140, 0
    %vm156 = vcmask 31744
    %v158 = vsel %vm156, %v152, 0
    %vm160 = vcmask 1041408
    %v162 = vsel %vm160, %v109, 0
    %164 = vmatpush.bf16.msra.mxu0 0
    %165 = vmatpush.bf16.msra.mxu0 0
    %166 = vmatpush.bf16.msra.mxu0 0
    %167 = vmatpush.bf16.msra.mxu0 0
    %168 = vmatpush.bf16.msra.mxu0 0
    %169 = vmatpush.bf16.msra.mxu0 0
    %170 = vmatpush.bf16.msra.mxu0 0
    %171 = vmatpush.bf16.msra.mxu0 %v162
    %172 = vmatmul.bf16.gmra.mxu0 %v158
    %v173 = vpop.f32.mrf.mxu0
    %v174 = vadd.f32 %v154, %v173
    %v175 = vpop.f32.mrf.mxu0
    %v176 = vadd.f32 %v154, %v175
    %177 = vdwg.mxu0
    %v178 = vtanh.pop %v174
    %v179 = vtanh.pop %v176
    %v180 = vpack.c.bf16 %v178, %v178
    %vm181 = vcmask 261120
    %v183 = vsel %vm181, %v180, 0
    %185 = vmatpush.bf16.msra.mxu0 0
    %186 = vmatpush.bf16.msra.mxu0 0
    %187 = vmatpush.bf16.msra.mxu0 0
    %188 = vmatpush.bf16.msra.mxu0 0
    %189 = vmatpush.bf16.msra.mxu0 0
    %190 = vmatpush.bf16.msra.mxu0 0
    %191 = vmatpush.bf16.msra.mxu0 %v127
    %192 = vmatpush.bf16.msra.mxu0 %v126
    %193 = vmatmul.bf16.gmra.mxu0 %v183
    %v194 = vpop.f32.mrf.mxu0
    %v195 = vadd.f32 0.0, %v194
    %v196 = vpop.f32.mrf.mxu0
    %197 = vdwg.mxu0
    %v199 = vrot.slane %v195, 7
    %v201 = vadd.f32 %v174, %v199
    %v202 = vtanh.pop %v201
    %v203 = vpack.c.bf16 %v179, %v179
    %v205 = vsel %vm181, %v203, 0
    %207 = vmatpush.bf16.msra.mxu0 0
    %208 = vmatpush.bf16.msra.mxu0 0
    %209 = vmatpush.bf16.msra.mxu0 0
    %210 = vmatpush.bf16.msra.mxu0 0
    %211 = vmatpush.bf16.msra.mxu0 0
    %212 = vmatpush.bf16.msra.mxu0 0
    %213 = vmatpush.bf16.msra.mxu0 %v127
    %214 = vmatpush.bf16.msra.mxu0 %v126
    %215 = vmatmul.bf16.gmra.mxu0 %v205
    %v216 = vpop.f32.mrf.mxu0
    %v217 = vadd.f32 0.0, %v216
    %v218 = vpop.f32.mrf.mxu0
    %219 = vdwg.mxu0
    %v221 = vrot.slane %v217, 7
    %v223 = vadd.f32 %v176, %v221
    %v224 = vtanh.pop %v223
    %225 = vmatpush.bf16.msra.mxu0 0
    %226 = vmatpush.bf16.msra.mxu0 0
    %227 = vmatpush.bf16.msra.mxu0 0
    %228 = vmatpush.bf16.msra.mxu0 0
    %229 = vmatpush.bf16.msra.mxu0 0
    %230 = vmatpush.bf16.msra.mxu0 0
    %231 = vmatpush.bf16.msra.mxu0 %v115
    %232 = vmatpush.bf16.msra.mxu0 %v114
    %233 = vmatmul.bf16.gmra.mxu0 %v183
    %v234 = vpop.f32.mrf.mxu0
    %v235 = vadd.f32 %v141, %v234
    %v236 = vpop.f32.mrf.mxu0
    %237 = vdwg.mxu0
    %v238 = vtanh.pop %v235
    %239 = vmatpush.bf16.msra.mxu0 0
    %240 = vmatpush.bf16.msra.mxu0 0
    %241 = vmatpush.bf16.msra.mxu0 0
    %242 = vmatpush.bf16.msra.mxu0 0
    %243 = vmatpush.bf16.msra.mxu0 0
    %244 = vmatpush.bf16.msra.mxu0 0
    %245 = vmatpush.bf16.msra.mxu0 %v115
    %246 = vmatpush.bf16.msra.mxu0 %v114
    %247 = vmatmul.bf16.gmra.mxu0 %v205
    %v248 = vpop.f32.mrf.mxu0
    %v249 = vadd.f32 %v141, %v248
    %v250 = vpop.f32.mrf.mxu0
    %251 = vdwg.mxu0
    %v252 = vtanh.pop %v249
    %v253 = vpack.c.bf16 %v202, %v202
    %v255 = vshrl.u32 %v253, 16
    %v258 = vsel %vm181, %v255, 0
    %260 = vmatpush.bf16.msra.mxu0 0
    %261 = vmatpush.bf16.msra.mxu0 0
    %262 = vmatpush.bf16.msra.mxu0 0
    %263 = vmatpush.bf16.msra.mxu0 0
    %264 = vmatpush.bf16.msra.mxu0 0
    %265 = vmatpush.bf16.msra.mxu0 0
    %266 = vmatpush.bf16.msra.mxu0 %v127
    %267 = vmatpush.bf16.msra.mxu0 %v126
    %268 = vmatmul.bf16.gmra.mxu0 %v258
    %v269 = vpop.f32.mrf.mxu0
    %v270 = vadd.f32 0.0, %v269
    %v271 = vpop.f32.mrf.mxu0
    %272 = vdwg.mxu0
    %v274 = vrot.slane %v270, 6
    %v276 = vadd.f32 %v174, %v274
    %v277 = vtanh.pop %v276
    %v278 = vpack.c.bf16 %v224, %v224
    %v280 = vshrl.u32 %v278, 16
    %v283 = vsel %vm181, %v280, 0
    %285 = vmatpush.bf16.msra.mxu0 0
    %286 = vmatpush.bf16.msra.mxu0 0
    %287 = vmatpush.bf16.msra.mxu0 0
    %288 = vmatpush.bf16.msra.mxu0 0
    %289 = vmatpush.bf16.msra.mxu0 0
    %290 = vmatpush.bf16.msra.mxu0 0
    %291 = vmatpush.bf16.msra.mxu0 %v127
    %292 = vmatpush.bf16.msra.mxu0 %v126
    %293 = vmatmul.bf16.gmra.mxu0 %v283
    %v294 = vpop.f32.mrf.mxu0
    %v295 = vadd.f32 0.0, %v294
    %v296 = vpop.f32.mrf.mxu0
    %297 = vdwg.mxu0
    %v299 = vrot.slane %v295, 6
    %v301 = vadd.f32 %v176, %v299
    %v302 = vtanh.pop %v301
    %303 = vmatpush.bf16.msra.mxu0 0
    %304 = vmatpush.bf16.msra.mxu0 0
    %305 = vmatpush.bf16.msra.mxu0 0
    %306 = vmatpush.bf16.msra.mxu0 0
    %307 = vmatpush.bf16.msra.mxu0 0
    %308 = vmatpush.bf16.msra.mxu0 0
    %309 = vmatpush.bf16.msra.mxu0 %v115
    %310 = vmatpush.bf16.msra.mxu0 %v114
    %311 = vmatmul.bf16.gmra.mxu0 %v258
    %v312 = vpop.f32.mrf.mxu0
    %v313 = vadd.f32 %v141, %v312
    %v314 = vpop.f32.mrf.mxu0
    %315 = vdwg.mxu0
    %v316 = vpack.c.bf16 %v238, %v238
    %v318 = vsel %vm181, %v316, 0
    %320 = vmatpush.bf16.msra.mxu0 0
    %321 = vmatpush.bf16.msra.mxu0 0
    %322 = vmatpush.bf16.msra.mxu0 0
    %323 = vmatpush.bf16.msra.mxu0 0
    %324 = vmatpush.bf16.msra.mxu0 0
    %325 = vmatpush.bf16.msra.mxu0 0
    %326 = vmatpush.bf16.msra.mxu0 %v133
    %327 = vmatpush.bf16.msra.mxu0 %v132
    %328 = vmatmul.bf16.gmra.mxu0 %v318
    %v329 = vpop.f32.mrf.mxu0
    %v330 = vadd.f32 0.0, %v329
    %v331 = vpop.f32.mrf.mxu0
    %332 = vdwg.mxu0
    %v333 = vadd.f32 %v313, %v330
    %v334 = vtanh.pop %v333
    %335 = vmatpush.bf16.msra.mxu0 0
    %336 = vmatpush.bf16.msra.mxu0 0
    %337 = vmatpush.bf16.msra.mxu0 0
    %338 = vmatpush.bf16.msra.mxu0 0
    %339 = vmatpush.bf16.msra.mxu0 0
    %340 = vmatpush.bf16.msra.mxu0 0
    %341 = vmatpush.bf16.msra.mxu0 %v115
    %342 = vmatpush.bf16.msra.mxu0 %v114
    %343 = vmatmul.bf16.gmra.mxu0 %v283
    %v344 = vpop.f32.mrf.mxu0
    %v345 = vadd.f32 %v141, %v344
    %v346 = vpop.f32.mrf.mxu0
    %347 = vdwg.mxu0
    %v348 = vpack.c.bf16 %v252, %v252
    %v350 = vsel %vm181, %v348, 0
    %352 = vmatpush.bf16.msra.mxu0 0
    %353 = vmatpush.bf16.msra.mxu0 0
    %354 = vmatpush.bf16.msra.mxu0 0
    %355 = vmatpush.bf16.msra.mxu0 0
    %356 = vmatpush.bf16.msra.mxu0 0
    %357 = vmatpush.bf16.msra.mxu0 0
    %358 = vmatpush.bf16.msra.mxu0 %v133
    %359 = vmatpush.bf16.msra.mxu0 %v132
    %360 = vmatmul.bf16.gmra.mxu0 %v350
    %v361 = vpop.f32.mrf.mxu0
    %v362 = vadd.f32 0.0, %v361
    %v363 = vpop.f32.mrf.mxu0
    %364 = vdwg.mxu0
    %v365 = vadd.f32 %v345, %v362
    %v366 = vtanh.pop %v365
    %367 = vmatpush.bf16.msra.mxu0 0
    %368 = vmatpush.bf16.msra.mxu0 0
    %369 = vmatpush.bf16.msra.mxu0 0
    %370 = vmatpush.bf16.msra.mxu0 0
    %371 = vmatpush.bf16.msra.mxu0 0
    %372 = vmatpush.bf16.msra.mxu0 0
    %373 = vmatpush.bf16.msra.mxu0 %v121
    %374 = vmatpush.bf16.msra.mxu0 %v120
    %375 = vmatmul.bf16.gmra.mxu0 %v318
    %v376 = vpop.f32.mrf.mxu0
    %v377 = vadd.f32 %v142, %v376
    %v378 = vpop.f32.mrf.mxu0
    %379 = vdwg.mxu0
    %v380 = vtanh.pop %v377
    %v381 = vpack.c.bf16 %v380, %v380
    %v383 = vsel %vm181, %v381, 0
    %385 = vmatpush.bf16.msra.mxu0 0
    %386 = vmatpush.bf16.msra.mxu0 0
    %387 = vmatpush.bf16.msra.mxu0 0
    %388 = vmatpush.bf16.msra.mxu0 0
    %389 = vmatpush.bf16.msra.mxu0 0
    %390 = vmatpush.bf16.msra.mxu0 0
    %391 = vmatpush.bf16.msra.mxu0 %v148
    %392 = vmatpush.bf16.msra.mxu0 %v147
    %393 = vmatmul.bf16.gmra.mxu0 %v383
    %v394 = vpop.f32.mrf.mxu0
    %v395 = vadd.f32 %v149, %v394
    %v396 = vpop.f32.mrf.mxu0
    %397 = vdwg.mxu0
    %vm398 = vcmask 24576
    %399 = vst.msk [vmem:[%s12] sm:$0x1] %vm398, %v395
    %400 = vmatpush.bf16.msra.mxu0 0
    %401 = vmatpush.bf16.msra.mxu0 0
    %402 = vmatpush.bf16.msra.mxu0 0
    %403 = vmatpush.bf16.msra.mxu0 0
    %404 = vmatpush.bf16.msra.mxu0 0
    %405 = vmatpush.bf16.msra.mxu0 0
    %406 = vmatpush.bf16.msra.mxu0 %v121
    %407 = vmatpush.bf16.msra.mxu0 %v120
    %408 = vmatmul.bf16.gmra.mxu0 %v350
    %v409 = vpop.f32.mrf.mxu0
    %v410 = vadd.f32 %v142, %v409
    %v411 = vpop.f32.mrf.mxu0
    %412 = vdwg.mxu0
    %v413 = vtanh.pop %v410
    %v414 = vpack.c.bf16 %v413, %v413
    %v416 = vsel %vm181, %v414, 0
    %418 = vmatpush.bf16.msra.mxu0 0
    %419 = vmatpush.bf16.msra.mxu0 0
    %420 = vmatpush.bf16.msra.mxu0 0
    %421 = vmatpush.bf16.msra.mxu0 0
    %422 = vmatpush.bf16.msra.mxu0 0
    %423 = vmatpush.bf16.msra.mxu0 0
    %424 = vmatpush.bf16.msra.mxu0 %v148
    %425 = vmatpush.bf16.msra.mxu0 %v147
    %426 = vmatmul.bf16.gmra.mxu0 %v416
    %v427 = vpop.f32.mrf.mxu0
    %v428 = vadd.f32 %v149, %v427
    %v429 = vpop.f32.mrf.mxu0
    %430 = vdwg.mxu0
    %431 = vst.msk [vmem:[%s12 + $0x8] sm:$0x1] %vm398, %v428
    %v432 = vpack.c.bf16 %v277, %v277
    %v434 = vrot.slane %v432, 1
    %v436 = vsel %vm181, %v434, 0
    %438 = vmatpush.bf16.msra.mxu0 0
    %439 = vmatpush.bf16.msra.mxu0 0
    %440 = vmatpush.bf16.msra.mxu0 0
    %441 = vmatpush.bf16.msra.mxu0 0
    %442 = vmatpush.bf16.msra.mxu0 0
    %443 = vmatpush.bf16.msra.mxu0 0
    %444 = vmatpush.bf16.msra.mxu0 %v127
    %445 = vmatpush.bf16.msra.mxu0 %v126
    %446 = vmatmul.bf16.gmra.mxu0 %v436
    %v447 = vpop.f32.mrf.mxu0
    %v448 = vadd.f32 0.0, %v447
    %v449 = vpop.f32.mrf.mxu0
    %450 = vdwg.mxu0
    %v452 = vrot.slane %v448, 5
    %v454 = vadd.f32 %v174, %v452
    %v455 = vtanh.pop %v454
    %v456 = vpack.c.bf16 %v302, %v302
    %v458 = vrot.slane %v456, 1
    %v460 = vsel %vm181, %v458, 0
    %462 = vmatpush.bf16.msra.mxu0 0
    %463 = vmatpush.bf16.msra.mxu0 0
    %464 = vmatpush.bf16.msra.mxu0 0
    %465 = vmatpush.bf16.msra.mxu0 0
    %466 = vmatpush.bf16.msra.mxu0 0
    %467 = vmatpush.bf16.msra.mxu0 0
    %468 = vmatpush.bf16.msra.mxu0 %v127
    %469 = vmatpush.bf16.msra.mxu0 %v126
    %470 = vmatmul.bf16.gmra.mxu0 %v460
    %v471 = vpop.f32.mrf.mxu0
    %v472 = vadd.f32 0.0, %v471
    %v473 = vpop.f32.mrf.mxu0
    %474 = vdwg.mxu0
    %v476 = vrot.slane %v472, 5
    %v478 = vadd.f32 %v176, %v476
    %v479 = vtanh.pop %v478
    %480 = vmatpush.bf16.msra.mxu0 0
    %481 = vmatpush.bf16.msra.mxu0 0
    %482 = vmatpush.bf16.msra.mxu0 0
    %483 = vmatpush.bf16.msra.mxu0 0
    %484 = vmatpush.bf16.msra.mxu0 0
    %485 = vmatpush.bf16.msra.mxu0 0
    %486 = vmatpush.bf16.msra.mxu0 %v115
    %487 = vmatpush.bf16.msra.mxu0 %v114
    %488 = vmatmul.bf16.gmra.mxu0 %v436
    %v489 = vpop.f32.mrf.mxu0
    %v490 = vadd.f32 %v141, %v489
    %v491 = vpop.f32.mrf.mxu0
    %492 = vdwg.mxu0
    %v493 = vpack.c.bf16 %v334, %v334
    %v495 = vsel %vm181, %v493, 0
    %497 = vmatpush.bf16.msra.mxu0 0
    %498 = vmatpush.bf16.msra.mxu0 0
    %499 = vmatpush.bf16.msra.mxu0 0
    %500 = vmatpush.bf16.msra.mxu0 0
    %501 = vmatpush.bf16.msra.mxu0 0
    %502 = vmatpush.bf16.msra.mxu0 0
    %503 = vmatpush.bf16.msra.mxu0 %v133
    %504 = vmatpush.bf16.msra.mxu0 %v132
    %505 = vmatmul.bf16.gmra.mxu0 %v495
    %v506 = vpop.f32.mrf.mxu0
    %v507 = vadd.f32 0.0, %v506
    %v508 = vpop.f32.mrf.mxu0
    %509 = vdwg.mxu0
    %v510 = vadd.f32 %v490, %v507
    %v511 = vtanh.pop %v510
    %512 = vmatpush.bf16.msra.mxu0 0
    %513 = vmatpush.bf16.msra.mxu0 0
    %514 = vmatpush.bf16.msra.mxu0 0
    %515 = vmatpush.bf16.msra.mxu0 0
    %516 = vmatpush.bf16.msra.mxu0 0
    %517 = vmatpush.bf16.msra.mxu0 0
    %518 = vmatpush.bf16.msra.mxu0 %v115
    %519 = vmatpush.bf16.msra.mxu0 %v114
    %520 = vmatmul.bf16.gmra.mxu0 %v460
    %v521 = vpop.f32.mrf.mxu0
    %v522 = vadd.f32 %v141, %v521
    %v523 = vpop.f32.mrf.mxu0
    %524 = vdwg.mxu0
    %v525 = vpack.c.bf16 %v366, %v366
    %v527 = vsel %vm181, %v525, 0
    %529 = vmatpush.bf16.msra.mxu0 0
    %530 = vmatpush.bf16.msra.mxu0 0
    %531 = vmatpush.bf16.msra.mxu0 0
    %532 = vmatpush.bf16.msra.mxu0 0
    %533 = vmatpush.bf16.msra.mxu0 0
    %534 = vmatpush.bf16.msra.mxu0 0
    %535 = vmatpush.bf16.msra.mxu0 %v133
    %536 = vmatpush.bf16.msra.mxu0 %v132
    %537 = vmatmul.bf16.gmra.mxu0 %v527
    %v538 = vpop.f32.mrf.mxu0
    %v539 = vadd.f32 0.0, %v538
    %v540 = vpop.f32.mrf.mxu0
    %541 = vdwg.mxu0
    %v542 = vadd.f32 %v522, %v539
    %v543 = vtanh.pop %v542
    %544 = vmatpush.bf16.msra.mxu0 0
    %545 = vmatpush.bf16.msra.mxu0 0
    %546 = vmatpush.bf16.msra.mxu0 0
    %547 = vmatpush.bf16.msra.mxu0 0
    %548 = vmatpush.bf16.msra.mxu0 0
    %549 = vmatpush.bf16.msra.mxu0 0
    %550 = vmatpush.bf16.msra.mxu0 %v121
    %551 = vmatpush.bf16.msra.mxu0 %v120
    %552 = vmatmul.bf16.gmra.mxu0 %v495
    %v553 = vpop.f32.mrf.mxu0
    %v554 = vadd.f32 %v142, %v553
    %v555 = vpop.f32.mrf.mxu0
    %556 = vdwg.mxu0
    %557 = vmatpush.bf16.msra.mxu0 0
    %558 = vmatpush.bf16.msra.mxu0 0
    %559 = vmatpush.bf16.msra.mxu0 0
    %560 = vmatpush.bf16.msra.mxu0 0
    %561 = vmatpush.bf16.msra.mxu0 0
    %562 = vmatpush.bf16.msra.mxu0 0
    %563 = vmatpush.bf16.msra.mxu0 %v139
    %564 = vmatpush.bf16.msra.mxu0 %v138
    %565 = vmatmul.bf16.gmra.mxu0 %v383
    %v566 = vpop.f32.mrf.mxu0
    %v567 = vadd.f32 0.0, %v566
    %v568 = vpop.f32.mrf.mxu0
    %569 = vdwg.mxu0
    %v570 = vadd.f32 %v554, %v567
    %v571 = vtanh.pop %v570
    %v572 = vpack.c.bf16 %v571, %v571
    %v574 = vsel %vm181, %v572, 0
    %576 = vmatpush.bf16.msra.mxu0 0
    %577 = vmatpush.bf16.msra.mxu0 0
    %578 = vmatpush.bf16.msra.mxu0 0
    %579 = vmatpush.bf16.msra.mxu0 0
    %580 = vmatpush.bf16.msra.mxu0 0
    %581 = vmatpush.bf16.msra.mxu0 0
    %582 = vmatpush.bf16.msra.mxu0 %v148
    %583 = vmatpush.bf16.msra.mxu0 %v147
    %584 = vmatmul.bf16.gmra.mxu0 %v574
    %v585 = vpop.f32.mrf.mxu0
    %v586 = vadd.f32 %v149, %v585
    %v587 = vpop.f32.mrf.mxu0
    %588 = vdwg.mxu0
    %589 = vst.msk [vmem:[%s12 + $0x1] sm:$0x1] %vm398, %v586
    %590 = vmatpush.bf16.msra.mxu0 0
    %591 = vmatpush.bf16.msra.mxu0 0
    %592 = vmatpush.bf16.msra.mxu0 0
    %593 = vmatpush.bf16.msra.mxu0 0
    %594 = vmatpush.bf16.msra.mxu0 0
    %595 = vmatpush.bf16.msra.mxu0 0
    %596 = vmatpush.bf16.msra.mxu0 %v121
    %597 = vmatpush.bf16.msra.mxu0 %v120
    %598 = vmatmul.bf16.gmra.mxu0 %v527
    %v599 = vpop.f32.mrf.mxu0
    %v600 = vadd.f32 %v142, %v599
    %v601 = vpop.f32.mrf.mxu0
    %602 = vdwg.mxu0
    %603 = vmatpush.bf16.msra.mxu0 0
    %604 = vmatpush.bf16.msra.mxu0 0
    %605 = vmatpush.bf16.msra.mxu0 0
    %606 = vmatpush.bf16.msra.mxu0 0
    %607 = vmatpush.bf16.msra.mxu0 0
    %608 = vmatpush.bf16.msra.mxu0 0
    %609 = vmatpush.bf16.msra.mxu0 %v139
    %610 = vmatpush.bf16.msra.mxu0 %v138
    %611 = vmatmul.bf16.gmra.mxu0 %v416
    %v612 = vpop.f32.mrf.mxu0
    %v613 = vadd.f32 0.0, %v612
    %v614 = vpop.f32.mrf.mxu0
    %615 = vdwg.mxu0
    %v616 = vadd.f32 %v600, %v613
    %v617 = vtanh.pop %v616
    %v618 = vpack.c.bf16 %v617, %v617
    %v620 = vsel %vm181, %v618, 0
    %622 = vmatpush.bf16.msra.mxu0 0
    %623 = vmatpush.bf16.msra.mxu0 0
    %624 = vmatpush.bf16.msra.mxu0 0
    %625 = vmatpush.bf16.msra.mxu0 0
    %626 = vmatpush.bf16.msra.mxu0 0
    %627 = vmatpush.bf16.msra.mxu0 0
    %628 = vmatpush.bf16.msra.mxu0 %v148
    %629 = vmatpush.bf16.msra.mxu0 %v147
    %630 = vmatmul.bf16.gmra.mxu0 %v620
    %v631 = vpop.f32.mrf.mxu0
    %v632 = vadd.f32 %v149, %v631
    %v633 = vpop.f32.mrf.mxu0
    %634 = vdwg.mxu0
    %635 = vst.msk [vmem:[%s12 + $0x9] sm:$0x1] %vm398, %v632
    %v636 = vpack.c.bf16 %v455, %v455
    %v638 = vshrl.u32 %v636, 16
    %v640 = vrot.slane %v638, 1
    %v642 = vsel %vm181, %v640, 0
    %644 = vmatpush.bf16.msra.mxu0 0
    %645 = vmatpush.bf16.msra.mxu0 0
    %646 = vmatpush.bf16.msra.mxu0 0
    %647 = vmatpush.bf16.msra.mxu0 0
    %648 = vmatpush.bf16.msra.mxu0 0
    %649 = vmatpush.bf16.msra.mxu0 0
    %650 = vmatpush.bf16.msra.mxu0 %v127
    %651 = vmatpush.bf16.msra.mxu0 %v126
    %652 = vmatmul.bf16.gmra.mxu0 %v642
    %v653 = vpop.f32.mrf.mxu0
    %v654 = vadd.f32 0.0, %v653
    %v655 = vpop.f32.mrf.mxu0
    %656 = vdwg.mxu0
    %v658 = vrot.slane %v654, 4
    %v660 = vadd.f32 %v174, %v658
    %v661 = vtanh.pop %v660
    %v662 = vpack.c.bf16 %v479, %v479
    %v664 = vshrl.u32 %v662, 16
    %v666 = vrot.slane %v664, 1
    %v668 = vsel %vm181, %v666, 0
    %670 = vmatpush.bf16.msra.mxu0 0
    %671 = vmatpush.bf16.msra.mxu0 0
    %672 = vmatpush.bf16.msra.mxu0 0
    %673 = vmatpush.bf16.msra.mxu0 0
    %674 = vmatpush.bf16.msra.mxu0 0
    %675 = vmatpush.bf16.msra.mxu0 0
    %676 = vmatpush.bf16.msra.mxu0 %v127
    %677 = vmatpush.bf16.msra.mxu0 %v126
    %678 = vmatmul.bf16.gmra.mxu0 %v668
    %v679 = vpop.f32.mrf.mxu0
    %v680 = vadd.f32 0.0, %v679
    %v681 = vpop.f32.mrf.mxu0
    %682 = vdwg.mxu0
    %v684 = vrot.slane %v680, 4
    %v686 = vadd.f32 %v176, %v684
    %v687 = vtanh.pop %v686
    %688 = vmatpush.bf16.msra.mxu0 0
    %689 = vmatpush.bf16.msra.mxu0 0
    %690 = vmatpush.bf16.msra.mxu0 0
    %691 = vmatpush.bf16.msra.mxu0 0
    %692 = vmatpush.bf16.msra.mxu0 0
    %693 = vmatpush.bf16.msra.mxu0 0
    %694 = vmatpush.bf16.msra.mxu0 %v115
    %695 = vmatpush.bf16.msra.mxu0 %v114
    %696 = vmatmul.bf16.gmra.mxu0 %v642
    %v697 = vpop.f32.mrf.mxu0
    %v698 = vadd.f32 %v141, %v697
    %v699 = vpop.f32.mrf.mxu0
    %700 = vdwg.mxu0
    %v701 = vpack.c.bf16 %v511, %v511
    %v703 = vsel %vm181, %v701, 0
    %705 = vmatpush.bf16.msra.mxu0 0
    %706 = vmatpush.bf16.msra.mxu0 0
    %707 = vmatpush.bf16.msra.mxu0 0
    %708 = vmatpush.bf16.msra.mxu0 0
    %709 = vmatpush.bf16.msra.mxu0 0
    %710 = vmatpush.bf16.msra.mxu0 0
    %711 = vmatpush.bf16.msra.mxu0 %v133
    %712 = vmatpush.bf16.msra.mxu0 %v132
    %713 = vmatmul.bf16.gmra.mxu0 %v703
    %v714 = vpop.f32.mrf.mxu0
    %v715 = vadd.f32 0.0, %v714
    %v716 = vpop.f32.mrf.mxu0
    %717 = vdwg.mxu0
    %v718 = vadd.f32 %v698, %v715
    %v719 = vtanh.pop %v718
    %720 = vmatpush.bf16.msra.mxu0 0
    %721 = vmatpush.bf16.msra.mxu0 0
    %722 = vmatpush.bf16.msra.mxu0 0
    %723 = vmatpush.bf16.msra.mxu0 0
    %724 = vmatpush.bf16.msra.mxu0 0
    %725 = vmatpush.bf16.msra.mxu0 0
    %726 = vmatpush.bf16.msra.mxu0 %v115
    %727 = vmatpush.bf16.msra.mxu0 %v114
    %728 = vmatmul.bf16.gmra.mxu0 %v668
    %v729 = vpop.f32.mrf.mxu0
    %v730 = vadd.f32 %v141, %v729
    %v731 = vpop.f32.mrf.mxu0
    %732 = vdwg.mxu0
    %v733 = vpack.c.bf16 %v543, %v543
    %v735 = vsel %vm181, %v733, 0
    %737 = vmatpush.bf16.msra.mxu0 0
    %738 = vmatpush.bf16.msra.mxu0 0
    %739 = vmatpush.bf16.msra.mxu0 0
    %740 = vmatpush.bf16.msra.mxu0 0
    %741 = vmatpush.bf16.msra.mxu0 0
    %742 = vmatpush.bf16.msra.mxu0 0
    %743 = vmatpush.bf16.msra.mxu0 %v133
    %744 = vmatpush.bf16.msra.mxu0 %v132
    %745 = vmatmul.bf16.gmra.mxu0 %v735
    %v746 = vpop.f32.mrf.mxu0
    %v747 = vadd.f32 0.0, %v746
    %v748 = vpop.f32.mrf.mxu0
    %749 = vdwg.mxu0
    %v750 = vadd.f32 %v730, %v747
    %v751 = vtanh.pop %v750
    %752 = vmatpush.bf16.msra.mxu0 0
    %753 = vmatpush.bf16.msra.mxu0 0
    %754 = vmatpush.bf16.msra.mxu0 0
    %755 = vmatpush.bf16.msra.mxu0 0
    %756 = vmatpush.bf16.msra.mxu0 0
    %757 = vmatpush.bf16.msra.mxu0 0
    %758 = vmatpush.bf16.msra.mxu0 %v121
    %759 = vmatpush.bf16.msra.mxu0 %v120
    %760 = vmatmul.bf16.gmra.mxu0 %v703
    %v761 = vpop.f32.mrf.mxu0
    %v762 = vadd.f32 %v142, %v761
    %v763 = vpop.f32.mrf.mxu0
    %764 = vdwg.mxu0
    %765 = vmatpush.bf16.msra.mxu0 0
    %766 = vmatpush.bf16.msra.mxu0 0
    %767 = vmatpush.bf16.msra.mxu0 0
    %768 = vmatpush.bf16.msra.mxu0 0
    %769 = vmatpush.bf16.msra.mxu0 0
    %770 = vmatpush.bf16.msra.mxu0 0
    %771 = vmatpush.bf16.msra.mxu0 %v139
    %772 = vmatpush.bf16.msra.mxu0 %v138
    %773 = vmatmul.bf16.gmra.mxu0 %v574
    %v774 = vpop.f32.mrf.mxu0
    %v775 = vadd.f32 0.0, %v774
    %v776 = vpop.f32.mrf.mxu0
    %777 = vdwg.mxu0
    %v778 = vadd.f32 %v762, %v775
    %v779 = vtanh.pop %v778
    %v780 = vpack.c.bf16 %v779, %v779
    %v782 = vsel %vm181, %v780, 0
    %784 = vmatpush.bf16.msra.mxu0 0
    %785 = vmatpush.bf16.msra.mxu0 0
    %786 = vmatpush.bf16.msra.mxu0 0
    %787 = vmatpush.bf16.msra.mxu0 0
    %788 = vmatpush.bf16.msra.mxu0 0
    %789 = vmatpush.bf16.msra.mxu0 0
    %790 = vmatpush.bf16.msra.mxu0 %v148
    %791 = vmatpush.bf16.msra.mxu0 %v147
    %792 = vmatmul.bf16.gmra.mxu0 %v782
    %v793 = vpop.f32.mrf.mxu0
    %v794 = vadd.f32 %v149, %v793
    %v795 = vpop.f32.mrf.mxu0
    %796 = vdwg.mxu0
    %797 = vst.msk [vmem:[%s12 + $0x2] sm:$0x1] %vm398, %v794
    %798 = vmatpush.bf16.msra.mxu0 0
    %799 = vmatpush.bf16.msra.mxu0 0
    %800 = vmatpush.bf16.msra.mxu0 0
    %801 = vmatpush.bf16.msra.mxu0 0
    %802 = vmatpush.bf16.msra.mxu0 0
    %803 = vmatpush.bf16.msra.mxu0 0
    %804 = vmatpush.bf16.msra.mxu0 %v121
    %805 = vmatpush.bf16.msra.mxu0 %v120
    %806 = vmatmul.bf16.gmra.mxu0 %v735
    %v807 = vpop.f32.mrf.mxu0
    %v808 = vadd.f32 %v142, %v807
    %v809 = vpop.f32.mrf.mxu0
    %810 = vdwg.mxu0
    %811 = vmatpush.bf16.msra.mxu0 0
    %812 = vmatpush.bf16.msra.mxu0 0
    %813 = vmatpush.bf16.msra.mxu0 0
    %814 = vmatpush.bf16.msra.mxu0 0
    %815 = vmatpush.bf16.msra.mxu0 0
    %816 = vmatpush.bf16.msra.mxu0 0
    %817 = vmatpush.bf16.msra.mxu0 %v139
    %818 = vmatpush.bf16.msra.mxu0 %v138
    %819 = vmatmul.bf16.gmra.mxu0 %v620
    %v820 = vpop.f32.mrf.mxu0
    %v821 = vadd.f32 0.0, %v820
    %v822 = vpop.f32.mrf.mxu0
    %823 = vdwg.mxu0
    %v824 = vadd.f32 %v808, %v821
    %v825 = vtanh.pop %v824
    %v826 = vpack.c.bf16 %v825, %v825
    %v828 = vsel %vm181, %v826, 0
    %830 = vmatpush.bf16.msra.mxu0 0
    %831 = vmatpush.bf16.msra.mxu0 0
    %832 = vmatpush.bf16.msra.mxu0 0
    %833 = vmatpush.bf16.msra.mxu0 0
    %834 = vmatpush.bf16.msra.mxu0 0
    %835 = vmatpush.bf16.msra.mxu0 0
    %836 = vmatpush.bf16.msra.mxu0 %v148
    %837 = vmatpush.bf16.msra.mxu0 %v147
    %838 = vmatmul.bf16.gmra.mxu0 %v828
    %v839 = vpop.f32.mrf.mxu0
    %v840 = vadd.f32 %v149, %v839
    %v841 = vpop.f32.mrf.mxu0
    %842 = vdwg.mxu0
    %843 = vst.msk [vmem:[%s12 + $0xa] sm:$0x1] %vm398, %v840
    %v844 = vpack.c.bf16 %v661, %v661
    %v846 = vrot.slane %v844, 2
    %v848 = vsel %vm181, %v846, 0
    %850 = vmatpush.bf16.msra.mxu0 0
    %851 = vmatpush.bf16.msra.mxu0 0
    %852 = vmatpush.bf16.msra.mxu0 0
    %853 = vmatpush.bf16.msra.mxu0 0
    %854 = vmatpush.bf16.msra.mxu0 0
    %855 = vmatpush.bf16.msra.mxu0 0
    %856 = vmatpush.bf16.msra.mxu0 %v127
    %857 = vmatpush.bf16.msra.mxu0 %v126
    %858 = vmatmul.bf16.gmra.mxu0 %v848
    %v859 = vpop.f32.mrf.mxu0
    %v860 = vadd.f32 0.0, %v859
    %v861 = vpop.f32.mrf.mxu0
    %862 = vdwg.mxu0
    %v864 = vrot.slane %v860, 3
    %v866 = vadd.f32 %v174, %v864
    %v867 = vtanh.pop %v866
    %v868 = vpack.c.bf16 %v687, %v687
    %v870 = vrot.slane %v868, 2
    %v872 = vsel %vm181, %v870, 0
    %874 = vmatpush.bf16.msra.mxu0 0
    %875 = vmatpush.bf16.msra.mxu0 0
    %876 = vmatpush.bf16.msra.mxu0 0
    %877 = vmatpush.bf16.msra.mxu0 0
    %878 = vmatpush.bf16.msra.mxu0 0
    %879 = vmatpush.bf16.msra.mxu0 0
    %880 = vmatpush.bf16.msra.mxu0 %v127
    %881 = vmatpush.bf16.msra.mxu0 %v126
    %882 = vmatmul.bf16.gmra.mxu0 %v872
    %v883 = vpop.f32.mrf.mxu0
    %v884 = vadd.f32 0.0, %v883
    %v885 = vpop.f32.mrf.mxu0
    %886 = vdwg.mxu0
    %v888 = vrot.slane %v884, 3
    %v890 = vadd.f32 %v176, %v888
    %v891 = vtanh.pop %v890
    %892 = vmatpush.bf16.msra.mxu0 0
    %893 = vmatpush.bf16.msra.mxu0 0
    %894 = vmatpush.bf16.msra.mxu0 0
    %895 = vmatpush.bf16.msra.mxu0 0
    %896 = vmatpush.bf16.msra.mxu0 0
    %897 = vmatpush.bf16.msra.mxu0 0
    %898 = vmatpush.bf16.msra.mxu0 %v115
    %899 = vmatpush.bf16.msra.mxu0 %v114
    %900 = vmatmul.bf16.gmra.mxu0 %v848
    %v901 = vpop.f32.mrf.mxu0
    %v902 = vadd.f32 %v141, %v901
    %v903 = vpop.f32.mrf.mxu0
    %904 = vdwg.mxu0
    %v905 = vpack.c.bf16 %v719, %v719
    %v907 = vsel %vm181, %v905, 0
    %909 = vmatpush.bf16.msra.mxu0 0
    %910 = vmatpush.bf16.msra.mxu0 0
    %911 = vmatpush.bf16.msra.mxu0 0
    %912 = vmatpush.bf16.msra.mxu0 0
    %913 = vmatpush.bf16.msra.mxu0 0
    %914 = vmatpush.bf16.msra.mxu0 0
    %915 = vmatpush.bf16.msra.mxu0 %v133
    %916 = vmatpush.bf16.msra.mxu0 %v132
    %917 = vmatmul.bf16.gmra.mxu0 %v907
    %v918 = vpop.f32.mrf.mxu0
    %v919 = vadd.f32 0.0, %v918
    %v920 = vpop.f32.mrf.mxu0
    %921 = vdwg.mxu0
    %v922 = vadd.f32 %v902, %v919
    %v923 = vtanh.pop %v922
    %924 = vmatpush.bf16.msra.mxu0 0
    %925 = vmatpush.bf16.msra.mxu0 0
    %926 = vmatpush.bf16.msra.mxu0 0
    %927 = vmatpush.bf16.msra.mxu0 0
    %928 = vmatpush.bf16.msra.mxu0 0
    %929 = vmatpush.bf16.msra.mxu0 0
    %930 = vmatpush.bf16.msra.mxu0 %v115
    %931 = vmatpush.bf16.msra.mxu0 %v114
    %932 = vmatmul.bf16.gmra.mxu0 %v872
    %v933 = vpop.f32.mrf.mxu0
    %v934 = vadd.f32 %v141, %v933
    %v935 = vpop.f32.mrf.mxu0
    %936 = vdwg.mxu0
    %v937 = vpack.c.bf16 %v751, %v751
    %v939 = vsel %vm181, %v937, 0
    %941 = vmatpush.bf16.msra.mxu0 0
    %942 = vmatpush.bf16.msra.mxu0 0
    %943 = vmatpush.bf16.msra.mxu0 0
    %944 = vmatpush.bf16.msra.mxu0 0
    %945 = vmatpush.bf16.msra.mxu0 0
    %946 = vmatpush.bf16.msra.mxu0 0
    %947 = vmatpush.bf16.msra.mxu0 %v133
    %948 = vmatpush.bf16.msra.mxu0 %v132
    %949 = vmatmul.bf16.gmra.mxu0 %v939
    %v950 = vpop.f32.mrf.mxu0
    %v951 = vadd.f32 0.0, %v950
    %v952 = vpop.f32.mrf.mxu0
    %953 = vdwg.mxu0
    %v954 = vadd.f32 %v934, %v951
    %v955 = vtanh.pop %v954
    %956 = vmatpush.bf16.msra.mxu0 0
    %957 = vmatpush.bf16.msra.mxu0 0
    %958 = vmatpush.bf16.msra.mxu0 0
    %959 = vmatpush.bf16.msra.mxu0 0
    %960 = vmatpush.bf16.msra.mxu0 0
    %961 = vmatpush.bf16.msra.mxu0 0
    %962 = vmatpush.bf16.msra.mxu0 %v121
    %963 = vmatpush.bf16.msra.mxu0 %v120
    %964 = vmatmul.bf16.gmra.mxu0 %v907
    %v965 = vpop.f32.mrf.mxu0
    %v966 = vadd.f32 %v142, %v965
    %v967 = vpop.f32.mrf.mxu0
    %968 = vdwg.mxu0
    %969 = vmatpush.bf16.msra.mxu0 0
    %970 = vmatpush.bf16.msra.mxu0 0
    %971 = vmatpush.bf16.msra.mxu0 0
    %972 = vmatpush.bf16.msra.mxu0 0
    %973 = vmatpush.bf16.msra.mxu0 0
    %974 = vmatpush.bf16.msra.mxu0 0
    %975 = vmatpush.bf16.msra.mxu0 %v139
    %976 = vmatpush.bf16.msra.mxu0 %v138
    %977 = vmatmul.bf16.gmra.mxu0 %v782
    %v978 = vpop.f32.mrf.mxu0
    %v979 = vadd.f32 0.0, %v978
    %v980 = vpop.f32.mrf.mxu0
    %981 = vdwg.mxu0
    %v982 = vadd.f32 %v966, %v979
    %v983 = vtanh.pop %v982
    %v984 = vpack.c.bf16 %v983, %v983
    %v986 = vsel %vm181, %v984, 0
    %988 = vmatpush.bf16.msra.mxu0 0
    %989 = vmatpush.bf16.msra.mxu0 0
    %990 = vmatpush.bf16.msra.mxu0 0
    %991 = vmatpush.bf16.msra.mxu0 0
    %992 = vmatpush.bf16.msra.mxu0 0
    %993 = vmatpush.bf16.msra.mxu0 0
    %994 = vmatpush.bf16.msra.mxu0 %v148
    %995 = vmatpush.bf16.msra.mxu0 %v147
    %996 = vmatmul.bf16.gmra.mxu0 %v986
    %v997 = vpop.f32.mrf.mxu0
    %v998 = vadd.f32 %v149, %v997
    %v999 = vpop.f32.mrf.mxu0
    %1000 = vdwg.mxu0
    %1001 = vst.msk [vmem:[%s12 + $0x3] sm:$0x1] %vm398, %v998
    %1002 = vmatpush.bf16.msra.mxu0 0
    %1003 = vmatpush.bf16.msra.mxu0 0
    %1004 = vmatpush.bf16.msra.mxu0 0
    %1005 = vmatpush.bf16.msra.mxu0 0
    %1006 = vmatpush.bf16.msra.mxu0 0
    %1007 = vmatpush.bf16.msra.mxu0 0
    %1008 = vmatpush.bf16.msra.mxu0 %v121
    %1009 = vmatpush.bf16.msra.mxu0 %v120
    %1010 = vmatmul.bf16.gmra.mxu0 %v939
    %v1011 = vpop.f32.mrf.mxu0
    %v1012 = vadd.f32 %v142, %v1011
    %v1013 = vpop.f32.mrf.mxu0
    %1014 = vdwg.mxu0
    %1015 = vmatpush.bf16.msra.mxu0 0
    %1016 = vmatpush.bf16.msra.mxu0 0
    %1017 = vmatpush.bf16.msra.mxu0 0
    %1018 = vmatpush.bf16.msra.mxu0 0
    %1019 = vmatpush.bf16.msra.mxu0 0
    %1020 = vmatpush.bf16.msra.mxu0 0
    %1021 = vmatpush.bf16.msra.mxu0 %v139
    %1022 = vmatpush.bf16.msra.mxu0 %v138
    %1023 = vmatmul.bf16.gmra.mxu0 %v828
    %v1024 = vpop.f32.mrf.mxu0
    %v1025 = vadd.f32 0.0, %v1024
    %v1026 = vpop.f32.mrf.mxu0
    %1027 = vdwg.mxu0
    %v1028 = vadd.f32 %v1012, %v1025
    %v1029 = vtanh.pop %v1028
    %v1030 = vpack.c.bf16 %v1029, %v1029
    %v1032 = vsel %vm181, %v1030, 0
    %1034 = vmatpush.bf16.msra.mxu0 0
    %1035 = vmatpush.bf16.msra.mxu0 0
    %1036 = vmatpush.bf16.msra.mxu0 0
    %1037 = vmatpush.bf16.msra.mxu0 0
    %1038 = vmatpush.bf16.msra.mxu0 0
    %1039 = vmatpush.bf16.msra.mxu0 0
    %1040 = vmatpush.bf16.msra.mxu0 %v148
    %1041 = vmatpush.bf16.msra.mxu0 %v147
    %1042 = vmatmul.bf16.gmra.mxu0 %v1032
    %v1043 = vpop.f32.mrf.mxu0
    %v1044 = vadd.f32 %v149, %v1043
    %v1045 = vpop.f32.mrf.mxu0
    %1046 = vdwg.mxu0
    %1047 = vst.msk [vmem:[%s12 + $0xb] sm:$0x1] %vm398, %v1044
    %v1048 = vpack.c.bf16 %v867, %v867
    %v1050 = vshrl.u32 %v1048, 16
    %v1052 = vrot.slane %v1050, 2
    %v1054 = vsel %vm181, %v1052, 0
    %1056 = vmatpush.bf16.msra.mxu0 0
    %1057 = vmatpush.bf16.msra.mxu0 0
    %1058 = vmatpush.bf16.msra.mxu0 0
    %1059 = vmatpush.bf16.msra.mxu0 0
    %1060 = vmatpush.bf16.msra.mxu0 0
    %1061 = vmatpush.bf16.msra.mxu0 0
    %1062 = vmatpush.bf16.msra.mxu0 %v127
    %1063 = vmatpush.bf16.msra.mxu0 %v126
    %1064 = vmatmul.bf16.gmra.mxu0 %v1054
    %v1065 = vpop.f32.mrf.mxu0
    %v1066 = vadd.f32 0.0, %v1065
    %v1067 = vpop.f32.mrf.mxu0
    %1068 = vdwg.mxu0
    %v1070 = vrot.slane %v1066, 2
    %v1072 = vadd.f32 %v174, %v1070
    %v1073 = vtanh.pop %v1072
    %v1074 = vpack.c.bf16 %v891, %v891
    %v1076 = vshrl.u32 %v1074, 16
    %v1078 = vrot.slane %v1076, 2
    %v1080 = vsel %vm181, %v1078, 0
    %1082 = vmatpush.bf16.msra.mxu0 0
    %1083 = vmatpush.bf16.msra.mxu0 0
    %1084 = vmatpush.bf16.msra.mxu0 0
    %1085 = vmatpush.bf16.msra.mxu0 0
    %1086 = vmatpush.bf16.msra.mxu0 0
    %1087 = vmatpush.bf16.msra.mxu0 0
    %1088 = vmatpush.bf16.msra.mxu0 %v127
    %1089 = vmatpush.bf16.msra.mxu0 %v126
    %1090 = vmatmul.bf16.gmra.mxu0 %v1080
    %v1091 = vpop.f32.mrf.mxu0
    %v1092 = vadd.f32 0.0, %v1091
    %v1093 = vpop.f32.mrf.mxu0
    %1094 = vdwg.mxu0
    %v1096 = vrot.slane %v1092, 2
    %v1098 = vadd.f32 %v176, %v1096
    %v1099 = vtanh.pop %v1098
    %1100 = vmatpush.bf16.msra.mxu0 0
    %1101 = vmatpush.bf16.msra.mxu0 0
    %1102 = vmatpush.bf16.msra.mxu0 0
    %1103 = vmatpush.bf16.msra.mxu0 0
    %1104 = vmatpush.bf16.msra.mxu0 0
    %1105 = vmatpush.bf16.msra.mxu0 0
    %1106 = vmatpush.bf16.msra.mxu0 %v115
    %1107 = vmatpush.bf16.msra.mxu0 %v114
    %1108 = vmatmul.bf16.gmra.mxu0 %v1054
    %v1109 = vpop.f32.mrf.mxu0
    %v1110 = vadd.f32 %v141, %v1109
    %v1111 = vpop.f32.mrf.mxu0
    %1112 = vdwg.mxu0
    %v1113 = vpack.c.bf16 %v923, %v923
    %v1115 = vsel %vm181, %v1113, 0
    %1117 = vmatpush.bf16.msra.mxu0 0
    %1118 = vmatpush.bf16.msra.mxu0 0
    %1119 = vmatpush.bf16.msra.mxu0 0
    %1120 = vmatpush.bf16.msra.mxu0 0
    %1121 = vmatpush.bf16.msra.mxu0 0
    %1122 = vmatpush.bf16.msra.mxu0 0
    %1123 = vmatpush.bf16.msra.mxu0 %v133
    %1124 = vmatpush.bf16.msra.mxu0 %v132
    %1125 = vmatmul.bf16.gmra.mxu0 %v1115
    %v1126 = vpop.f32.mrf.mxu0
    %v1127 = vadd.f32 0.0, %v1126
    %v1128 = vpop.f32.mrf.mxu0
    %1129 = vdwg.mxu0
    %v1130 = vadd.f32 %v1110, %v1127
    %v1131 = vtanh.pop %v1130
    %1132 = vmatpush.bf16.msra.mxu0 0
    %1133 = vmatpush.bf16.msra.mxu0 0
    %1134 = vmatpush.bf16.msra.mxu0 0
    %1135 = vmatpush.bf16.msra.mxu0 0
    %1136 = vmatpush.bf16.msra.mxu0 0
    %1137 = vmatpush.bf16.msra.mxu0 0
    %1138 = vmatpush.bf16.msra.mxu0 %v115
    %1139 = vmatpush.bf16.msra.mxu0 %v114
    %1140 = vmatmul.bf16.gmra.mxu0 %v1080
    %v1141 = vpop.f32.mrf.mxu0
    %v1142 = vadd.f32 %v141, %v1141
    %v1143 = vpop.f32.mrf.mxu0
    %1144 = vdwg.mxu0
    %v1145 = vpack.c.bf16 %v955, %v955
    %v1147 = vsel %vm181, %v1145, 0
    %1149 = vmatpush.bf16.msra.mxu0 0
    %1150 = vmatpush.bf16.msra.mxu0 0
    %1151 = vmatpush.bf16.msra.mxu0 0
    %1152 = vmatpush.bf16.msra.mxu0 0
    %1153 = vmatpush.bf16.msra.mxu0 0
    %1154 = vmatpush.bf16.msra.mxu0 0
    %1155 = vmatpush.bf16.msra.mxu0 %v133
    %1156 = vmatpush.bf16.msra.mxu0 %v132
    %1157 = vmatmul.bf16.gmra.mxu0 %v1147
    %v1158 = vpop.f32.mrf.mxu0
    %v1159 = vadd.f32 0.0, %v1158
    %v1160 = vpop.f32.mrf.mxu0
    %1161 = vdwg.mxu0
    %v1162 = vadd.f32 %v1142, %v1159
    %v1163 = vtanh.pop %v1162
    %1164 = vmatpush.bf16.msra.mxu0 0
    %1165 = vmatpush.bf16.msra.mxu0 0
    %1166 = vmatpush.bf16.msra.mxu0 0
    %1167 = vmatpush.bf16.msra.mxu0 0
    %1168 = vmatpush.bf16.msra.mxu0 0
    %1169 = vmatpush.bf16.msra.mxu0 0
    %1170 = vmatpush.bf16.msra.mxu0 %v121
    %1171 = vmatpush.bf16.msra.mxu0 %v120
    %1172 = vmatmul.bf16.gmra.mxu0 %v1115
    %v1173 = vpop.f32.mrf.mxu0
    %v1174 = vadd.f32 %v142, %v1173
    %v1175 = vpop.f32.mrf.mxu0
    %1176 = vdwg.mxu0
    %1177 = vmatpush.bf16.msra.mxu0 0
    %1178 = vmatpush.bf16.msra.mxu0 0
    %1179 = vmatpush.bf16.msra.mxu0 0
    %1180 = vmatpush.bf16.msra.mxu0 0
    %1181 = vmatpush.bf16.msra.mxu0 0
    %1182 = vmatpush.bf16.msra.mxu0 0
    %1183 = vmatpush.bf16.msra.mxu0 %v139
    %1184 = vmatpush.bf16.msra.mxu0 %v138
    %1185 = vmatmul.bf16.gmra.mxu0 %v986
    %v1186 = vpop.f32.mrf.mxu0
    %v1187 = vadd.f32 0.0, %v1186
    %v1188 = vpop.f32.mrf.mxu0
    %1189 = vdwg.mxu0
    %v1190 = vadd.f32 %v1174, %v1187
    %v1191 = vtanh.pop %v1190
    %v1192 = vpack.c.bf16 %v1191, %v1191
    %v1194 = vsel %vm181, %v1192, 0
    %1196 = vmatpush.bf16.msra.mxu0 0
    %1197 = vmatpush.bf16.msra.mxu0 0
    %1198 = vmatpush.bf16.msra.mxu0 0
    %1199 = vmatpush.bf16.msra.mxu0 0
    %1200 = vmatpush.bf16.msra.mxu0 0
    %1201 = vmatpush.bf16.msra.mxu0 0
    %1202 = vmatpush.bf16.msra.mxu0 %v148
    %1203 = vmatpush.bf16.msra.mxu0 %v147
    %1204 = vmatmul.bf16.gmra.mxu0 %v1194
    %v1205 = vpop.f32.mrf.mxu0
    %v1206 = vadd.f32 %v149, %v1205
    %v1207 = vpop.f32.mrf.mxu0
    %1208 = vdwg.mxu0
    %1209 = vst.msk [vmem:[%s12 + $0x4] sm:$0x1] %vm398, %v1206
    %1210 = vmatpush.bf16.msra.mxu0 0
    %1211 = vmatpush.bf16.msra.mxu0 0
    %1212 = vmatpush.bf16.msra.mxu0 0
    %1213 = vmatpush.bf16.msra.mxu0 0
    %1214 = vmatpush.bf16.msra.mxu0 0
    %1215 = vmatpush.bf16.msra.mxu0 0
    %1216 = vmatpush.bf16.msra.mxu0 %v121
    %1217 = vmatpush.bf16.msra.mxu0 %v120
    %1218 = vmatmul.bf16.gmra.mxu0 %v1147
    %v1219 = vpop.f32.mrf.mxu0
    %v1220 = vadd.f32 %v142, %v1219
    %v1221 = vpop.f32.mrf.mxu0
    %1222 = vdwg.mxu0
    %1223 = vmatpush.bf16.msra.mxu0 0
    %1224 = vmatpush.bf16.msra.mxu0 0
    %1225 = vmatpush.bf16.msra.mxu0 0
    %1226 = vmatpush.bf16.msra.mxu0 0
    %1227 = vmatpush.bf16.msra.mxu0 0
    %1228 = vmatpush.bf16.msra.mxu0 0
    %1229 = vmatpush.bf16.msra.mxu0 %v139
    %1230 = vmatpush.bf16.msra.mxu0 %v138
    %1231 = vmatmul.bf16.gmra.mxu0 %v1032
    %v1232 = vpop.f32.mrf.mxu0
    %v1233 = vadd.f32 0.0, %v1232
    %v1234 = vpop.f32.mrf.mxu0
    %1235 = vdwg.mxu0
    %v1236 = vadd.f32 %v1220, %v1233
    %v1237 = vtanh.pop %v1236
    %v1238 = vpack.c.bf16 %v1237, %v1237
    %v1240 = vsel %vm181, %v1238, 0
    %1242 = vmatpush.bf16.msra.mxu0 0
    %1243 = vmatpush.bf16.msra.mxu0 0
    %1244 = vmatpush.bf16.msra.mxu0 0
    %1245 = vmatpush.bf16.msra.mxu0 0
    %1246 = vmatpush.bf16.msra.mxu0 0
    %1247 = vmatpush.bf16.msra.mxu0 0
    %1248 = vmatpush.bf16.msra.mxu0 %v148
    %1249 = vmatpush.bf16.msra.mxu0 %v147
    %1250 = vmatmul.bf16.gmra.mxu0 %v1240
    %v1251 = vpop.f32.mrf.mxu0
    %v1252 = vadd.f32 %v149, %v1251
    %v1253 = vpop.f32.mrf.mxu0
    %1254 = vdwg.mxu0
    %1255 = vst.msk [vmem:[%s12 + $0xc] sm:$0x1] %vm398, %v1252
    %v1256 = vpack.c.bf16 %v1073, %v1073
    %v1258 = vrot.slane %v1256, 3
    %v1260 = vsel %vm181, %v1258, 0
    %1262 = vmatpush.bf16.msra.mxu0 0
    %1263 = vmatpush.bf16.msra.mxu0 0
    %1264 = vmatpush.bf16.msra.mxu0 0
    %1265 = vmatpush.bf16.msra.mxu0 0
    %1266 = vmatpush.bf16.msra.mxu0 0
    %1267 = vmatpush.bf16.msra.mxu0 0
    %1268 = vmatpush.bf16.msra.mxu0 %v127
    %1269 = vmatpush.bf16.msra.mxu0 %v126
    %1270 = vmatmul.bf16.gmra.mxu0 %v1260
    %v1271 = vpop.f32.mrf.mxu0
    %v1272 = vadd.f32 0.0, %v1271
    %v1273 = vpop.f32.mrf.mxu0
    %1274 = vdwg.mxu0
    %v1276 = vrot.slane %v1272, 1
    %v1278 = vadd.f32 %v174, %v1276
    %v1279 = vtanh.pop %v1278
    %v1280 = vpack.c.bf16 %v1099, %v1099
    %v1282 = vrot.slane %v1280, 3
    %v1284 = vsel %vm181, %v1282, 0
    %1286 = vmatpush.bf16.msra.mxu0 0
    %1287 = vmatpush.bf16.msra.mxu0 0
    %1288 = vmatpush.bf16.msra.mxu0 0
    %1289 = vmatpush.bf16.msra.mxu0 0
    %1290 = vmatpush.bf16.msra.mxu0 0
    %1291 = vmatpush.bf16.msra.mxu0 0
    %1292 = vmatpush.bf16.msra.mxu0 %v127
    %1293 = vmatpush.bf16.msra.mxu0 %v126
    %1294 = vmatmul.bf16.gmra.mxu0 %v1284
    %v1295 = vpop.f32.mrf.mxu0
    %v1296 = vadd.f32 0.0, %v1295
    %v1297 = vpop.f32.mrf.mxu0
    %1298 = vdwg.mxu0
    %v1300 = vrot.slane %v1296, 1
    %v1302 = vadd.f32 %v176, %v1300
    %v1303 = vtanh.pop %v1302
    %1304 = vmatpush.bf16.msra.mxu0 0
    %1305 = vmatpush.bf16.msra.mxu0 0
    %1306 = vmatpush.bf16.msra.mxu0 0
    %1307 = vmatpush.bf16.msra.mxu0 0
    %1308 = vmatpush.bf16.msra.mxu0 0
    %1309 = vmatpush.bf16.msra.mxu0 0
    %1310 = vmatpush.bf16.msra.mxu0 %v115
    %1311 = vmatpush.bf16.msra.mxu0 %v114
    %1312 = vmatmul.bf16.gmra.mxu0 %v1260
    %v1313 = vpop.f32.mrf.mxu0
    %v1314 = vadd.f32 %v141, %v1313
    %v1315 = vpop.f32.mrf.mxu0
    %1316 = vdwg.mxu0
    %v1317 = vpack.c.bf16 %v1131, %v1131
    %v1319 = vsel %vm181, %v1317, 0
    %1321 = vmatpush.bf16.msra.mxu0 0
    %1322 = vmatpush.bf16.msra.mxu0 0
    %1323 = vmatpush.bf16.msra.mxu0 0
    %1324 = vmatpush.bf16.msra.mxu0 0
    %1325 = vmatpush.bf16.msra.mxu0 0
    %1326 = vmatpush.bf16.msra.mxu0 0
    %1327 = vmatpush.bf16.msra.mxu0 %v133
    %1328 = vmatpush.bf16.msra.mxu0 %v132
    %1329 = vmatmul.bf16.gmra.mxu0 %v1319
    %v1330 = vpop.f32.mrf.mxu0
    %v1331 = vadd.f32 0.0, %v1330
    %v1332 = vpop.f32.mrf.mxu0
    %1333 = vdwg.mxu0
    %v1334 = vadd.f32 %v1314, %v1331
    %v1335 = vtanh.pop %v1334
    %1336 = vmatpush.bf16.msra.mxu0 0
    %1337 = vmatpush.bf16.msra.mxu0 0
    %1338 = vmatpush.bf16.msra.mxu0 0
    %1339 = vmatpush.bf16.msra.mxu0 0
    %1340 = vmatpush.bf16.msra.mxu0 0
    %1341 = vmatpush.bf16.msra.mxu0 0
    %1342 = vmatpush.bf16.msra.mxu0 %v115
    %1343 = vmatpush.bf16.msra.mxu0 %v114
    %1344 = vmatmul.bf16.gmra.mxu0 %v1284
    %v1345 = vpop.f32.mrf.mxu0
    %v1346 = vadd.f32 %v141, %v1345
    %v1347 = vpop.f32.mrf.mxu0
    %1348 = vdwg.mxu0
    %v1349 = vpack.c.bf16 %v1163, %v1163
    %v1351 = vsel %vm181, %v1349, 0
    %1353 = vmatpush.bf16.msra.mxu0 0
    %1354 = vmatpush.bf16.msra.mxu0 0
    %1355 = vmatpush.bf16.msra.mxu0 0
    %1356 = vmatpush.bf16.msra.mxu0 0
    %1357 = vmatpush.bf16.msra.mxu0 0
    %1358 = vmatpush.bf16.msra.mxu0 0
    %1359 = vmatpush.bf16.msra.mxu0 %v133
    %1360 = vmatpush.bf16.msra.mxu0 %v132
    %1361 = vmatmul.bf16.gmra.mxu0 %v1351
    %v1362 = vpop.f32.mrf.mxu0
    %v1363 = vadd.f32 0.0, %v1362
    %v1364 = vpop.f32.mrf.mxu0
    %1365 = vdwg.mxu0
    %v1366 = vadd.f32 %v1346, %v1363
    %v1367 = vtanh.pop %v1366
    %1368 = vmatpush.bf16.msra.mxu0 0
    %1369 = vmatpush.bf16.msra.mxu0 0
    %1370 = vmatpush.bf16.msra.mxu0 0
    %1371 = vmatpush.bf16.msra.mxu0 0
    %1372 = vmatpush.bf16.msra.mxu0 0
    %1373 = vmatpush.bf16.msra.mxu0 0
    %1374 = vmatpush.bf16.msra.mxu0 %v121
    %1375 = vmatpush.bf16.msra.mxu0 %v120
    %1376 = vmatmul.bf16.gmra.mxu0 %v1319
    %v1377 = vpop.f32.mrf.mxu0
    %v1378 = vadd.f32 %v142, %v1377
    %v1379 = vpop.f32.mrf.mxu0
    %1380 = vdwg.mxu0
    %1381 = vmatpush.bf16.msra.mxu0 0
    %1382 = vmatpush.bf16.msra.mxu0 0
    %1383 = vmatpush.bf16.msra.mxu0 0
    %1384 = vmatpush.bf16.msra.mxu0 0
    %1385 = vmatpush.bf16.msra.mxu0 0
    %1386 = vmatpush.bf16.msra.mxu0 0
    %1387 = vmatpush.bf16.msra.mxu0 %v139
    %1388 = vmatpush.bf16.msra.mxu0 %v138
    %1389 = vmatmul.bf16.gmra.mxu0 %v1194
    %v1390 = vpop.f32.mrf.mxu0
    %v1391 = vadd.f32 0.0, %v1390
    %v1392 = vpop.f32.mrf.mxu0
    %1393 = vdwg.mxu0
    %v1394 = vadd.f32 %v1378, %v1391
    %v1395 = vtanh.pop %v1394
    %v1396 = vpack.c.bf16 %v1395, %v1395
    %v1398 = vsel %vm181, %v1396, 0
    %1400 = vmatpush.bf16.msra.mxu0 0
    %1401 = vmatpush.bf16.msra.mxu0 0
    %1402 = vmatpush.bf16.msra.mxu0 0
    %1403 = vmatpush.bf16.msra.mxu0 0
    %1404 = vmatpush.bf16.msra.mxu0 0
    %1405 = vmatpush.bf16.msra.mxu0 0
    %1406 = vmatpush.bf16.msra.mxu0 %v148
    %1407 = vmatpush.bf16.msra.mxu0 %v147
    %1408 = vmatmul.bf16.gmra.mxu0 %v1398
    %v1409 = vpop.f32.mrf.mxu0
    %v1410 = vadd.f32 %v149, %v1409
    %v1411 = vpop.f32.mrf.mxu0
    %1412 = vdwg.mxu0
    %1413 = vst.msk [vmem:[%s12 + $0x5] sm:$0x1] %vm398, %v1410
    %1414 = vmatpush.bf16.msra.mxu0 0
    %1415 = vmatpush.bf16.msra.mxu0 0
    %1416 = vmatpush.bf16.msra.mxu0 0
    %1417 = vmatpush.bf16.msra.mxu0 0
    %1418 = vmatpush.bf16.msra.mxu0 0
    %1419 = vmatpush.bf16.msra.mxu0 0
    %1420 = vmatpush.bf16.msra.mxu0 %v121
    %1421 = vmatpush.bf16.msra.mxu0 %v120
    %1422 = vmatmul.bf16.gmra.mxu0 %v1351
    %v1423 = vpop.f32.mrf.mxu0
    %v1424 = vadd.f32 %v142, %v1423
    %v1425 = vpop.f32.mrf.mxu0
    %1426 = vdwg.mxu0
    %1427 = vmatpush.bf16.msra.mxu0 0
    %1428 = vmatpush.bf16.msra.mxu0 0
    %1429 = vmatpush.bf16.msra.mxu0 0
    %1430 = vmatpush.bf16.msra.mxu0 0
    %1431 = vmatpush.bf16.msra.mxu0 0
    %1432 = vmatpush.bf16.msra.mxu0 0
    %1433 = vmatpush.bf16.msra.mxu0 %v139
    %1434 = vmatpush.bf16.msra.mxu0 %v138
    %1435 = vmatmul.bf16.gmra.mxu0 %v1240
    %v1436 = vpop.f32.mrf.mxu0
    %v1437 = vadd.f32 0.0, %v1436
    %v1438 = vpop.f32.mrf.mxu0
    %1439 = vdwg.mxu0
    %v1440 = vadd.f32 %v1424, %v1437
    %v1441 = vtanh.pop %v1440
    %v1442 = vpack.c.bf16 %v1441, %v1441
    %v1444 = vsel %vm181, %v1442, 0
    %1446 = vmatpush.bf16.msra.mxu0 0
    %1447 = vmatpush.bf16.msra.mxu0 0
    %1448 = vmatpush.bf16.msra.mxu0 0
    %1449 = vmatpush.bf16.msra.mxu0 0
    %1450 = vmatpush.bf16.msra.mxu0 0
    %1451 = vmatpush.bf16.msra.mxu0 0
    %1452 = vmatpush.bf16.msra.mxu0 %v148
    %1453 = vmatpush.bf16.msra.mxu0 %v147
    %1454 = vmatmul.bf16.gmra.mxu0 %v1444
    %v1455 = vpop.f32.mrf.mxu0
    %v1456 = vadd.f32 %v149, %v1455
    %v1457 = vpop.f32.mrf.mxu0
    %1458 = vdwg.mxu0
    %1459 = vst.msk [vmem:[%s12 + $0xd] sm:$0x1] %vm398, %v1456
    %v1460 = vpack.c.bf16 %v1279, %v1279
    %v1462 = vshrl.u32 %v1460, 16
    %v1464 = vrot.slane %v1462, 3
    %v1466 = vsel %vm181, %v1464, 0
    %1468 = vmatpush.bf16.msra.mxu0 0
    %1469 = vmatpush.bf16.msra.mxu0 0
    %1470 = vmatpush.bf16.msra.mxu0 0
    %1471 = vmatpush.bf16.msra.mxu0 0
    %1472 = vmatpush.bf16.msra.mxu0 0
    %1473 = vmatpush.bf16.msra.mxu0 0
    %1474 = vmatpush.bf16.msra.mxu0 %v115
    %1475 = vmatpush.bf16.msra.mxu0 %v114
    %1476 = vmatmul.bf16.gmra.mxu0 %v1466
    %v1477 = vpop.f32.mrf.mxu0
    %v1478 = vadd.f32 %v141, %v1477
    %v1479 = vpop.f32.mrf.mxu0
    %1480 = vdwg.mxu0
    %v1481 = vpack.c.bf16 %v1335, %v1335
    %v1483 = vsel %vm181, %v1481, 0
    %1485 = vmatpush.bf16.msra.mxu0 0
    %1486 = vmatpush.bf16.msra.mxu0 0
    %1487 = vmatpush.bf16.msra.mxu0 0
    %1488 = vmatpush.bf16.msra.mxu0 0
    %1489 = vmatpush.bf16.msra.mxu0 0
    %1490 = vmatpush.bf16.msra.mxu0 0
    %1491 = vmatpush.bf16.msra.mxu0 %v133
    %1492 = vmatpush.bf16.msra.mxu0 %v132
    %1493 = vmatmul.bf16.gmra.mxu0 %v1483
    %v1494 = vpop.f32.mrf.mxu0
    %v1495 = vadd.f32 0.0, %v1494
    %v1496 = vpop.f32.mrf.mxu0
    %1497 = vdwg.mxu0
    %v1498 = vadd.f32 %v1478, %v1495
    %v1499 = vtanh.pop %v1498
    %v1500 = vpack.c.bf16 %v1303, %v1303
    %v1502 = vshrl.u32 %v1500, 16
    %v1504 = vrot.slane %v1502, 3
    %v1506 = vsel %vm181, %v1504, 0
    %1508 = vmatpush.bf16.msra.mxu0 0
    %1509 = vmatpush.bf16.msra.mxu0 0
    %1510 = vmatpush.bf16.msra.mxu0 0
    %1511 = vmatpush.bf16.msra.mxu0 0
    %1512 = vmatpush.bf16.msra.mxu0 0
    %1513 = vmatpush.bf16.msra.mxu0 0
    %1514 = vmatpush.bf16.msra.mxu0 %v115
    %1515 = vmatpush.bf16.msra.mxu0 %v114
    %1516 = vmatmul.bf16.gmra.mxu0 %v1506
    %v1517 = vpop.f32.mrf.mxu0
    %v1518 = vadd.f32 %v141, %v1517
    %v1519 = vpop.f32.mrf.mxu0
    %1520 = vdwg.mxu0
    %v1521 = vpack.c.bf16 %v1367, %v1367
    %v1523 = vsel %vm181, %v1521, 0
    %1525 = vmatpush.bf16.msra.mxu0 0
    %1526 = vmatpush.bf16.msra.mxu0 0
    %1527 = vmatpush.bf16.msra.mxu0 0
    %1528 = vmatpush.bf16.msra.mxu0 0
    %1529 = vmatpush.bf16.msra.mxu0 0
    %1530 = vmatpush.bf16.msra.mxu0 0
    %1531 = vmatpush.bf16.msra.mxu0 %v133
    %1532 = vmatpush.bf16.msra.mxu0 %v132
    %1533 = vmatmul.bf16.gmra.mxu0 %v1523
    %v1534 = vpop.f32.mrf.mxu0
    %v1535 = vadd.f32 0.0, %v1534
    %v1536 = vpop.f32.mrf.mxu0
    %1537 = vdwg.mxu0
    %v1538 = vadd.f32 %v1518, %v1535
    %v1539 = vtanh.pop %v1538
    %1540 = vmatpush.bf16.msra.mxu0 0
    %1541 = vmatpush.bf16.msra.mxu0 0
    %1542 = vmatpush.bf16.msra.mxu0 0
    %1543 = vmatpush.bf16.msra.mxu0 0
    %1544 = vmatpush.bf16.msra.mxu0 0
    %1545 = vmatpush.bf16.msra.mxu0 0
    %1546 = vmatpush.bf16.msra.mxu0 %v121
    %1547 = vmatpush.bf16.msra.mxu0 %v120
    %1548 = vmatmul.bf16.gmra.mxu0 %v1483
    %v1549 = vpop.f32.mrf.mxu0
    %v1550 = vadd.f32 %v142, %v1549
    %v1551 = vpop.f32.mrf.mxu0
    %1552 = vdwg.mxu0
    %1553 = vmatpush.bf16.msra.mxu0 0
    %1554 = vmatpush.bf16.msra.mxu0 0
    %1555 = vmatpush.bf16.msra.mxu0 0
    %1556 = vmatpush.bf16.msra.mxu0 0
    %1557 = vmatpush.bf16.msra.mxu0 0
    %1558 = vmatpush.bf16.msra.mxu0 0
    %1559 = vmatpush.bf16.msra.mxu0 %v139
    %1560 = vmatpush.bf16.msra.mxu0 %v138
    %1561 = vmatmul.bf16.gmra.mxu0 %v1398
    %v1562 = vpop.f32.mrf.mxu0
    %v1563 = vadd.f32 0.0, %v1562
    %v1564 = vpop.f32.mrf.mxu0
    %1565 = vdwg.mxu0
    %v1566 = vadd.f32 %v1550, %v1563
    %v1567 = vtanh.pop %v1566
    %v1568 = vpack.c.bf16 %v1567, %v1567
    %v1570 = vsel %vm181, %v1568, 0
    %1572 = vmatpush.bf16.msra.mxu0 0
    %1573 = vmatpush.bf16.msra.mxu0 0
    %1574 = vmatpush.bf16.msra.mxu0 0
    %1575 = vmatpush.bf16.msra.mxu0 0
    %1576 = vmatpush.bf16.msra.mxu0 0
    %1577 = vmatpush.bf16.msra.mxu0 0
    %1578 = vmatpush.bf16.msra.mxu0 %v148
    %1579 = vmatpush.bf16.msra.mxu0 %v147
    %1580 = vmatmul.bf16.gmra.mxu0 %v1570
    %v1581 = vpop.f32.mrf.mxu0
    %v1582 = vadd.f32 %v149, %v1581
    %v1583 = vpop.f32.mrf.mxu0
    %1584 = vdwg.mxu0
    %1585 = vst.msk [vmem:[%s12 + $0x6] sm:$0x1] %vm398, %v1582
    %1586 = vmatpush.bf16.msra.mxu0 0
    %1587 = vmatpush.bf16.msra.mxu0 0
    %1588 = vmatpush.bf16.msra.mxu0 0
    %1589 = vmatpush.bf16.msra.mxu0 0
    %1590 = vmatpush.bf16.msra.mxu0 0
    %1591 = vmatpush.bf16.msra.mxu0 0
    %1592 = vmatpush.bf16.msra.mxu0 %v121
    %1593 = vmatpush.bf16.msra.mxu0 %v120
    %1594 = vmatmul.bf16.gmra.mxu0 %v1523
    %v1595 = vpop.f32.mrf.mxu0
    %v1596 = vadd.f32 %v142, %v1595
    %v1597 = vpop.f32.mrf.mxu0
    %1598 = vdwg.mxu0
    %1599 = vmatpush.bf16.msra.mxu0 0
    %1600 = vmatpush.bf16.msra.mxu0 0
    %1601 = vmatpush.bf16.msra.mxu0 0
    %1602 = vmatpush.bf16.msra.mxu0 0
    %1603 = vmatpush.bf16.msra.mxu0 0
    %1604 = vmatpush.bf16.msra.mxu0 0
    %1605 = vmatpush.bf16.msra.mxu0 %v139
    %1606 = vmatpush.bf16.msra.mxu0 %v138
    %1607 = vmatmul.bf16.gmra.mxu0 %v1444
    %v1608 = vpop.f32.mrf.mxu0
    %v1609 = vadd.f32 0.0, %v1608
    %v1610 = vpop.f32.mrf.mxu0
    %1611 = vdwg.mxu0
    %v1612 = vadd.f32 %v1596, %v1609
    %v1613 = vtanh.pop %v1612
    %v1614 = vpack.c.bf16 %v1613, %v1613
    %v1616 = vsel %vm181, %v1614, 0
    %1618 = vmatpush.bf16.msra.mxu0 0
    %1619 = vmatpush.bf16.msra.mxu0 0
    %1620 = vmatpush.bf16.msra.mxu0 0
    %1621 = vmatpush.bf16.msra.mxu0 0
    %1622 = vmatpush.bf16.msra.mxu0 0
    %1623 = vmatpush.bf16.msra.mxu0 0
    %1624 = vmatpush.bf16.msra.mxu0 %v148
    %1625 = vmatpush.bf16.msra.mxu0 %v147
    %1626 = vmatmul.bf16.gmra.mxu0 %v1616
    %v1627 = vpop.f32.mrf.mxu0
    %v1628 = vadd.f32 %v149, %v1627
    %v1629 = vpop.f32.mrf.mxu0
    %1630 = vdwg.mxu0
    %1631 = vst.msk [vmem:[%s12 + $0xe] sm:$0x1] %vm398, %v1628
    %v1632 = vpack.c.bf16 %v1499, %v1499
    %v1634 = vsel %vm181, %v1632, 0
    %1636 = vmatpush.bf16.msra.mxu0 0
    %1637 = vmatpush.bf16.msra.mxu0 0
    %1638 = vmatpush.bf16.msra.mxu0 0
    %1639 = vmatpush.bf16.msra.mxu0 0
    %1640 = vmatpush.bf16.msra.mxu0 0
    %1641 = vmatpush.bf16.msra.mxu0 0
    %1642 = vmatpush.bf16.msra.mxu0 %v121
    %1643 = vmatpush.bf16.msra.mxu0 %v120
    %1644 = vmatmul.bf16.gmra.mxu0 %v1634
    %v1645 = vpop.f32.mrf.mxu0
    %v1646 = vadd.f32 %v142, %v1645
    %v1647 = vpop.f32.mrf.mxu0
    %1648 = vdwg.mxu0
    %1649 = vmatpush.bf16.msra.mxu0 0
    %1650 = vmatpush.bf16.msra.mxu0 0
    %1651 = vmatpush.bf16.msra.mxu0 0
    %1652 = vmatpush.bf16.msra.mxu0 0
    %1653 = vmatpush.bf16.msra.mxu0 0
    %1654 = vmatpush.bf16.msra.mxu0 0
    %1655 = vmatpush.bf16.msra.mxu0 %v139
    %1656 = vmatpush.bf16.msra.mxu0 %v138
    %1657 = vmatmul.bf16.gmra.mxu0 %v1570
    %v1658 = vpop.f32.mrf.mxu0
    %v1659 = vadd.f32 0.0, %v1658
    %v1660 = vpop.f32.mrf.mxu0
    %1661 = vdwg.mxu0
    %v1662 = vadd.f32 %v1646, %v1659
    %v1663 = vtanh.pop %v1662
    %v1664 = vpack.c.bf16 %v1663, %v1663
    %v1666 = vsel %vm181, %v1664, 0
    %1668 = vmatpush.bf16.msra.mxu0 0
    %1669 = vmatpush.bf16.msra.mxu0 0
    %1670 = vmatpush.bf16.msra.mxu0 0
    %1671 = vmatpush.bf16.msra.mxu0 0
    %1672 = vmatpush.bf16.msra.mxu0 0
    %1673 = vmatpush.bf16.msra.mxu0 0
    %1674 = vmatpush.bf16.msra.mxu0 %v148
    %1675 = vmatpush.bf16.msra.mxu0 %v147
    %1676 = vmatmul.bf16.gmra.mxu0 %v1666
    %v1677 = vpop.f32.mrf.mxu0
    %v1678 = vadd.f32 %v149, %v1677
    %v1679 = vpop.f32.mrf.mxu0
    %1680 = vdwg.mxu0
    %1681 = vst.msk [vmem:[%s12 + $0x7] sm:$0x1] %vm398, %v1678
    %v1682 = vpack.c.bf16 %v1539, %v1539
    %v1684 = vsel %vm181, %v1682, 0
    %1686 = vmatpush.bf16.msra.mxu0 0
    %1687 = vmatpush.bf16.msra.mxu0 0
    %1688 = vmatpush.bf16.msra.mxu0 0
    %1689 = vmatpush.bf16.msra.mxu0 0
    %1690 = vmatpush.bf16.msra.mxu0 0
    %1691 = vmatpush.bf16.msra.mxu0 0
    %1692 = vmatpush.bf16.msra.mxu0 %v121
    %1693 = vmatpush.bf16.msra.mxu0 %v120
    %1694 = vmatmul.bf16.gmra.mxu0 %v1684
    %v1695 = vpop.f32.mrf.mxu0
    %v1696 = vadd.f32 %v142, %v1695
    %v1697 = vpop.f32.mrf.mxu0
    %1698 = vdwg.mxu0
    %1699 = vmatpush.bf16.msra.mxu0 0
    %1700 = vmatpush.bf16.msra.mxu0 0
    %1701 = vmatpush.bf16.msra.mxu0 0
    %1702 = vmatpush.bf16.msra.mxu0 0
    %1703 = vmatpush.bf16.msra.mxu0 0
    %1704 = vmatpush.bf16.msra.mxu0 0
    %1705 = vmatpush.bf16.msra.mxu0 %v139
    %1706 = vmatpush.bf16.msra.mxu0 %v138
    %1707 = vmatmul.bf16.gmra.mxu0 %v1616
    %v1708 = vpop.f32.mrf.mxu0
    %v1709 = vadd.f32 0.0, %v1708
    %v1710 = vpop.f32.mrf.mxu0
    %1711 = vdwg.mxu0
    %v1712 = vadd.f32 %v1696, %v1709
    %v1713 = vtanh.pop %v1712
    %v1714 = vpack.c.bf16 %v1713, %v1713
    %v1716 = vsel %vm181, %v1714, 0
    %1718 = vmatpush.bf16.msra.mxu0 0
    %1719 = vmatpush.bf16.msra.mxu0 0
    %1720 = vmatpush.bf16.msra.mxu0 0
    %1721 = vmatpush.bf16.msra.mxu0 0
    %1722 = vmatpush.bf16.msra.mxu0 0
    %1723 = vmatpush.bf16.msra.mxu0 0
    %1724 = vmatpush.bf16.msra.mxu0 %v148
    %1725 = vmatpush.bf16.msra.mxu0 %v147
    %1726 = vmatmul.bf16.gmra.mxu0 %v1716
    %v1727 = vpop.f32.mrf.mxu0
    %v1728 = vadd.f32 %v149, %v1727
    %v1729 = vpop.f32.mrf.mxu0
    %1730 = vdwg.mxu0
    %1731 = vst.msk [vmem:[%s12 + $0xf] sm:$0x1] %vm398, %v1728
    %v1733 = vrot.slane %v1279, 7
    %v1736 = vrot.slane %v1303, 6
    %vm1738 = vcmask 1040384
    %v1739 = vsel %vm1738, %v1733, %v1736
    %vm1740 = vcmask 254976
    %1741 = vst.msk [vmem:[#allocation10] sm:$0x3] %vm1740, %v1739
    %v1743 = vrot.slane %v1539, 7
    %v1745 = vsel %vm1738, %v1499, %v1743
    %s1746 = scalar_lea.vmem [#allocation10], 2
    %1747 = vst.msk [vmem:[%s1746] sm:$0x3] %vm1740, %v1745
    %v1749 = vrot.slane %v1713, 7
    %v1751 = vsel %vm1738, %v1663, %v1749
    %s1752 = scalar_lea.vmem [#allocation10], 4
    %1753 = vst.msk [vmem:[%s1752] sm:$0x3] %vm1740, %v1751
    // Predicated region
    $region66: #{rnn_forward.1} parent=1 // pred_check
      _
    $region67: #{rnn_forward.1} parent=1 // pred_check_branch
      %1755 = sbr.rel (0) target = $region69
    $region68: #{rnn_forward.1} parent=1 // pred_region
      _
    $region69: #{rnn_forward.1} parent=1 // pred_fallthru
      _
    // Predicated region
    $region70: #{rnn_forward.1} parent=1 // pred_check
      _
    $region71: #{rnn_forward.1} parent=1 // pred_check_branch
      %1757 = sbr.rel (0) target = $region73
    $region72: #{rnn_forward.1} parent=1 // pred_region
      %1759 = vsyncadd [#allocation4], 0
      %s1760 = sshll.u32 [#allocation10], 4
      %s1761 = int_to_ptr.vmem [resolvable:$true] %s1760
      %s1762 = sshll.u32 %s13, 4
      %s1763 = int_to_ptr.hbm [resolvable:$true] %s1762
      %1768 = dma.vmem_to_hbm [thread:$0]  %s1761, 96, %s1763, [#allocation4], 32, 32, 2
    $region73: #{rnn_forward.1} parent=1 // pred_fallthru
      _
    // Predicated region
    $region74: #{rnn_forward.1} parent=1 // pred_check
      _
    $region75: #{rnn_forward.1} parent=1 // pred_check_branch
      %1770 = sbr.rel (0) target = $region77
    $region76: #{rnn_forward.1} parent=1 // pred_region
      _
    $region77: #{rnn_forward.1} parent=1 // pred_fallthru
      _
    // Predicated region
    $region78: #{rnn_forward.1} parent=1 // pred_check
      _
    $region79: #{rnn_forward.1} parent=1 // pred_check_branch
      %1772 = sbr.rel (0) target = $region81
    $region80: #{rnn_forward.1} parent=1 // pred_region
      %1774 = dma.done [#allocation4], 96
    $region81: #{rnn_forward.1} parent=1 // pred_fallthru
      _
    %1775 = vsyncpa [#allocation3], 1
    %1776 = vsyncpa [#allocation6], 1
    %1777 = vsyncpa [#allocation9], 1
    %1778 = vsyncpa [#allocation4], 1

</llo_original>
